<compile_context>
chip_gen: v7x
topology: tpu7x:2x2x1
jax: 0.10.0
libtpu: 0.0.40
codegen_flags: <defaults>
</compile_context>

<pallas_src>
import math

import numpy as np
import jax
import jax.numpy as jnp
from jax import lax
from jax.experimental import pallas as pl
from jax.experimental.pallas import tpu as pltpu

SQRT_HALF = math.sqrt(0.5)

# ------------------- model hyper-parameters (small, synthetic) -------------------
N_VOCAB = 32
EMBED_DIM = 32       # text embedding / encoder channel / attention dim
CONV_CH = 32         # decoder & converter conv channels
MEL_DIM = 16
R = 1                # outputs per step
LINEAR_DIM = 64
KSIZE = 3

# packed (lane-dense, 128-wide) output slab layout (lane-friendly offsets):
#   [ mel (16) | done (1) | pad (15) | linear (64) | alignment (T_text) | pad ]
PACK_W = 128
OFF_MEL = 0
OFF_DONE = 16
OFF_LIN = 32
OFF_ALN = 96

CONST_W = 128        # lane width of the packed resident constant buffer


# ------------------------------ in-kernel helpers ------------------------------


def _shift_rows(x, d, t_col):
    """y[t] = x[t - d], zero outside [0, T).  d is a compile-time Python int.

    t_col is a hoisted (T, 1) int32 row-index (broadcasted_iota computed once
    per sequence length and reused by every tap)."""
    if d == 0:
        return x
    T = x.shape[0]
    rolled = pltpu.roll(x, shift=d % T, axis=0)          # sublane rotation (XLU)
    if d > 0:
        return jnp.where(t_col >= d, rolled, 0.0)
    return jnp.where(t_col < T + d, rolled, 0.0)


def _mm_bias(x, wb):
    """x @ W + b; bias stored as the last row of the weight slab.  bf16 MXU operands,
    f32 accumulation, bias added in f32."""
    kin = wb.shape[0] - 1
    y = jnp.dot(x.astype(jnp.bfloat16), wb[0:kin, :].astype(jnp.bfloat16),
                preferred_element_type=jnp.float32)
    return y + wb[kin:kin + 1, :]


def _conv_glu(x, wb, t_col, *, causal):
    """Conv1dGLU: the K shifted taps are lane-concatenated and contracted in a
    single MXU matmul, then GLU + residual, entirely in VMEM.

    x: (T, C).  wb: (K*C + 1, 2*C); rows k*C:(k+1)*C are tap k, last row is bias."""
    T, C = x.shape
    n2 = wb.shape[1]
    K = (wb.shape[0] - 1) // C
    pad_l = K - 1 if causal else (K - 1) // 2
    xcat = jnp.concatenate([_shift_rows(x, pad_l - k, t_col) for k in range(K)],
                           axis=-1)                        # (T, K*C)
    y = jnp.dot(xcat.astype(jnp.bfloat16), wb[0:K * C, :].astype(jnp.bfloat16),
                preferred_element_type=jnp.float32)
    y = y + wb[K * C:K * C + 1, :]
    half = n2 // 2
    a = y[:, :half]
    g = y[:, half:]
    return (a * jax.nn.sigmoid(g) + x) * SQRT_HALF


# ------------------------------ the fused kernel ------------------------------


def _make_kernel(offs, T_text, T_dec):
    """Build the fused kernel closed over static section offsets of the constant buffer."""
    pad_mid = OFF_LIN - (OFF_DONE + 1)            # zero columns between done and linear
    pad_end = PACK_W - (OFF_ALN + T_text)         # zero columns after the alignments

    def kernel(emb_ref, mel_ref, c_ref, out_ref):
        def sl(name):                             # static-slice a section out of the
            off, r, c = offs[name]                # packed resident constant buffer
            return c_ref[off:off + r, 0:c]

        emb = emb_ref[0]                          # (Tt, E)
        mel_in = mel_ref[0]                       # (Td, MEL_DIM*R)
        Td = mel_in.shape[0]

        # hoisted shift-mask row indices (one per sequence length, reused by all taps)
        t_tt = lax.broadcasted_iota(jnp.int32, (T_text, 1), 0)
        t_td = lax.broadcasted_iota(jnp.int32, (T_dec, 1), 0)

        # ---------------- Encoder ----------------
        keys = _conv_glu(emb, sl("enc"), t_tt, causal=False)    # (Tt, E), residual = emb
        values = (keys + emb) * SQRT_HALF
        keys_a = keys + sl("tpe")                                # key position embedding

        # ---------------- Decoder ----------------
        # prenet: 1x1 conv (linear) + ReLU, then causal Conv1dGLUs
        x = jnp.maximum(_mm_bias(mel_in, sl("prenet")), 0.0)     # (Td, C)
        x = _conv_glu(x, sl("pre"), t_td, causal=True)
        x = _conv_glu(x, sl("dec"), t_td, causal=True)

        # attention: query pos-embed, softmax over keys, context, output projection
        # TODO(synk): query position embedding applied once before the (single) attention,
        #             matching v1 of this kernel rather than the multi-hop reference exactly.
        q = x + sl("fpe")
        qp = _mm_bias(q, sl("q"))                                # (Td, E)
        scores = lax.dot_general(                                # qp @ keys_a.T, no transpose copy
            qp.astype(jnp.bfloat16), keys_a.astype(jnp.bfloat16),
            (((1,), (1,)), ((), ())), preferred_element_type=jnp.float32)  # (Td, Tt)
        scores = scores - jnp.max(scores, axis=-1, keepdims=True)
        e = jnp.exp(scores)
        probs = e * pl.reciprocal(jnp.sum(e, axis=-1, keepdims=True), approx=True)
        ctx = jnp.dot(probs.astype(jnp.bfloat16), values.astype(jnp.bfloat16),
                      preferred_element_type=jnp.float32)
        att = _mm_bias(ctx, sl("o"))                             # sqrt(Tk) pre-folded into W_out
        dec_states = (att + q) * SQRT_HALF                       # (Td, C)

        # decoder output heads
        pre = _mm_bias(dec_states, sl("last"))                   # (Td, MEL_DIM*R), pre-sigmoid mel
        mel_out = jax.nn.sigmoid(pre)
        dwb = sl("done")                                         # (2, 16): row0 = w, row1[0] = b
        done = jax.nn.sigmoid(
            jnp.sum(pre * dwb[0:1, :], axis=-1, keepdims=True) + dwb[1:2, 0:1])  # VPU reduction

        # ---------------- Converter ----------------
        h = _conv_glu(dec_states, sl("cvt"), t_td, causal=False)  # residual = decoder states
        lin = jax.nn.sigmoid(_mm_bias(h, sl("cvtlast")))           # (Td, LINEAR_DIM)

        # -------- single unmasked, lane-dense 128-wide store --------
        parts = [mel_out, done,
                 jnp.zeros((Td, pad_mid), jnp.float32),
                 lin, probs]
        if pad_end:
            parts.append(jnp.zeros((Td, pad_end), jnp.float32))
        out_ref[0] = jnp.concatenate(parts, axis=-1)              # (Td, 128)

    return kernel


# ------------------------------- JAX glue --------------------------------------


def sinusoid_pe(T, d, position_rate=1.0):
    """Deterministic (frozen) sinusoidal position encodings, positions 1..T."""
    pos = np.arange(1, T + 1)[:, None].astype(np.float64)
    i = np.arange(d)[None, :]
    angle = position_rate * pos / np.power(10000.0, 2 * (i // 2) / d)
    pe = np.zeros((T, d), np.float32)
    pe[:, 0::2] = np.sin(angle[:, 0::2])
    pe[:, 1::2] = np.cos(angle[:, 1::2])
    return jnp.asarray(pe)


def init_params(key):
    def nrm(k, shape, scale=0.1):
        return scale * jax.random.normal(k, shape, jnp.float32)

    ks = jax.random.split(key, 24)
    p = {
        # encoder
        "embed_tokens": nrm(ks[0], (N_VOCAB, EMBED_DIM), 1.0),
        "enc_conv_w": nrm(ks[1], (KSIZE * EMBED_DIM, 2 * EMBED_DIM)),
        "enc_conv_b": nrm(ks[2], (2 * EMBED_DIM,)),
        # decoder prenet
        "prenet_w": nrm(ks[3], (MEL_DIM * R, CONV_CH)),
        "prenet_b": nrm(ks[4], (CONV_CH,)),
        "pre_conv_w": nrm(ks[5], (KSIZE * CONV_CH, 2 * CONV_CH)),
        "pre_conv_b": nrm(ks[6], (2 * CONV_CH,)),
        # decoder conv + attention
        "dec_conv_w": nrm(ks[7], (KSIZE * CONV_CH, 2 * CONV_CH)),
        "dec_conv_b": nrm(ks[8], (2 * CONV_CH,)),
        "attn_wq": nrm(ks[9], (CONV_CH, EMBED_DIM)),
        "attn_bq": nrm(ks[10], (EMBED_DIM,)),
        "attn_wo": nrm(ks[11], (EMBED_DIM, CONV_CH)),
        "attn_bo": nrm(ks[12], (CONV_CH,)),
        # decoder output
        "last_w": nrm(ks[13], (CONV_CH, MEL_DIM * R)),
        "last_b": nrm(ks[14], (MEL_DIM * R,)),
        "done_w": nrm(ks[15], (MEL_DIM * R, 1)),
        "done_b": nrm(ks[16], (1,)),
        # converter
        "cvt_conv_w": nrm(ks[17], (KSIZE * CONV_CH, 2 * CONV_CH)),
        "cvt_conv_b": nrm(ks[18], (2 * CONV_CH,)),
        "cvt_last_w": nrm(ks[19], (CONV_CH, LINEAR_DIM)),
        "cvt_last_b": nrm(ks[20], (LINEAR_DIM,)),
    }
    return p


def _pack_constants(p, text_pe, frame_pe, T_text):
    """Pack every weight slab (bias folded as last row) + the frozen positional
    encodings into ONE 128-lane-wide, sublane-aligned resident buffer."""
    def wb(w, b):
        return jnp.concatenate([w, b[None, :]], axis=0)

    # fold the attention context scale Tk * sqrt(1/Tk) = sqrt(Tk) into W_out (bias unscaled)
    wo_scaled = p["attn_wo"] * math.sqrt(float(T_text))
    # done head as a (2, 16) block: row0 = weight row, row1[0] = bias  (VPU-reduction form)
    done_blk = jnp.concatenate(
        [p["done_w"].T,
         jnp.concatenate([p["done_b"][None, :],
                          jnp.zeros((1, MEL_DIM * R - 1), jnp.float32)], axis=1)],
        axis=0)

    sections = [
        ("enc", wb(p["enc_conv_w"], p["enc_conv_b"])),
        ("prenet", wb(p["prenet_w"], p["prenet_b"])),
        ("pre", wb(p["pre_conv_w"], p["pre_conv_b"])),
        ("dec", wb(p["dec_conv_w"], p["dec_conv_b"])),
        ("q", wb(p["attn_wq"], p["attn_bq"])),
        ("o", wb(wo_scaled, p["attn_bo"])),
        ("last", wb(p["last_w"], p["last_b"])),
        ("done", done_blk),
        ("cvt", wb(p["cvt_conv_w"], p["cvt_conv_b"])),
        ("cvtlast", wb(p["cvt_last_w"], p["cvt_last_b"])),
        ("tpe", text_pe),
        ("fpe", frame_pe),
    ]

    offsets = {}
    chunks = []
    cur = 0
    for name, arr in sections:
        r, c = arr.shape
        offsets[name] = (cur, r, c)
        r_pad = (-r) % 8                              # keep every section sublane-aligned
        chunks.append(jnp.pad(arr.astype(jnp.float32), ((0, r_pad), (0, CONST_W - c))))
        cur += r + r_pad
    const_buf = jnp.concatenate(chunks, axis=0)       # (total_rows, 128)
    return const_buf, offsets


def deepvoice3_forward(p, text_sequences, mel_targets):
    B, T_text = text_sequences.shape
    T_dec = mel_targets.shape[1]
    # TODO(synk): give alignments their own output buffer once OFF_ALN + T_text > 128.
    assert OFF_ALN + T_text <= PACK_W, "packed output slab too narrow for T_text"

    # embedding lookup (XLA gather) + frozen positional encodings
    emb = jnp.take(p["embed_tokens"], text_sequences, axis=0)           # (B, Tt, E)
    text_pe = sinusoid_pe(T_text, EMBED_DIM)
    frame_pe = sinusoid_pe(T_dec, CONV_CH)

    const_buf, offs = _pack_constants(p, text_pe, frame_pe, T_text)
    kernel = _make_kernel(offs, T_text, T_dec)

    packed = pl.pallas_call(
        kernel,
        out_shape=jax.ShapeDtypeStruct((B, T_dec, PACK_W), jnp.float32),
        grid=(B,),
        in_specs=[
            pl.BlockSpec((1, T_text, EMBED_DIM), lambda i: (i, 0, 0)),    # emb (per batch)
            pl.BlockSpec((1, T_dec, MEL_DIM * R), lambda i: (i, 0, 0)),   # mel targets
            pl.BlockSpec(const_buf.shape, lambda i: (0, 0)),              # packed constants
        ],
        out_specs=pl.BlockSpec((1, T_dec, PACK_W), lambda i: (i, 0, 0)),
        compiler_params=pltpu.CompilerParams(
            dimension_semantics=("parallel",),
            vmem_limit_bytes=32 * 1024 * 1024),
    )(emb, mel_targets, const_buf)

    mel_outputs = packed[:, :, OFF_MEL:OFF_MEL + MEL_DIM * R].reshape(B, T_dec * R, MEL_DIM)
    done = packed[:, :, OFF_DONE:OFF_DONE + 1]                           # (B, Td, 1)
    linear_outputs = packed[:, :, OFF_LIN:OFF_LIN + LINEAR_DIM]          # (B, Td, LIN)
    alignments = packed[:, :, OFF_ALN:OFF_ALN + T_text][None]            # (1, B, Td, Tt)
    return mel_outputs, linear_outputs, alignments, done


if __name__ == "__main__":
    key = jax.random.PRNGKey(0)
    k_par, k_txt, k_mel = jax.random.split(key, 3)

    params = init_params(k_par)

    B, T_TEXT, T_DEC = 2, 8, 8
    text_sequences = jax.random.randint(k_txt, (B, T_TEXT), 0, N_VOCAB, dtype=jnp.int32)
    mel_targets = jax.random.uniform(k_mel, (B, T_DEC, MEL_DIM * R), dtype=jnp.float32)

    mel_out, lin_out, aligns, done = jax.jit(deepvoice3_forward)(
        params, text_sequences, mel_targets)
    jax.block_until_ready((mel_out, lin_out, aligns, done))

    assert mel_out.shape == (B, T_DEC, MEL_DIM)
    assert lin_out.shape == (B, T_DEC, LINEAR_DIM)
    assert aligns.shape == (1, B, T_DEC, T_TEXT)
    assert done.shape == (B, T_DEC, 1)
    print("KERNEL_OK")
</pallas_src>

<mosaic_0001>
module attributes {stable_mosaic.version = 11 : i64} {
  func.func @kernel(%arg0: i32, %arg1: memref<1x8x32xf32, #tpu.memory_space<vmem>>, %arg2: memref<1x8x16xf32, #tpu.memory_space<vmem>>, %arg3: memref<624x128xf32, #tpu.memory_space<vmem>>, %arg4: memref<1x8x128xf32, #tpu.memory_space<vmem>>) attributes {dimension_semantics = [#tpu.dimension_semantics<parallel>], iteration_bounds = array<i64: 2>, scalar_prefetch = 0 : i64, scratch_operands = 0 : i64, tpu.core_type = #tpu.core_type<tc>, window_params = [{transform_indices = @transform_0, window_bounds = array<i64: 1, 8, 32>}, {transform_indices = @transform_1, window_bounds = array<i64: 1, 8, 16>}, {pipeline_mode = #tpu.pipeline_mode<synchronous>, transform_indices = @transform_2, window_bounds = array<i64: 624, 128>}, {transform_indices = @transform_3, window_bounds = array<i64: 1, 8, 128>}]} {
    %c0 = arith.constant 0 : index
    %c0_0 = arith.constant 0 : index
    %c0_1 = arith.constant 0 : index
    %0 = vector.load %arg1[%c0, %c0_0, %c0_1] : memref<1x8x32xf32, #tpu.memory_space<vmem>>, vector<1x8x32xf32>
    %1 = vector.shape_cast %0 : vector<1x8x32xf32> to vector<8x32xf32>
    %c0_2 = arith.constant 0 : index
    %c0_3 = arith.constant 0 : index
    %c0_4 = arith.constant 0 : index
    %2 = vector.load %arg2[%c0_2, %c0_3, %c0_4] : memref<1x8x16xf32, #tpu.memory_space<vmem>>, vector<1x8x16xf32>
    %3 = vector.shape_cast %2 : vector<1x8x16xf32> to vector<8x16xf32>
    %4 = tpu.iota {dimensions = array<i32: 0>} : vector<8x1xi32>
    %5 = tpu.iota {dimensions = array<i32: 0>} : vector<8x1xi32>
    %c0_5 = arith.constant 0 : index
    %c0_6 = arith.constant 0 : index
    %6 = vector.load %arg3[%c0_5, %c0_6] : memref<624x128xf32, #tpu.memory_space<vmem>>, vector<97x64xf32>
    %c1_i32 = arith.constant 1 : i32
    %7 = tpu.dynamic_rotate %1 by %c1_i32 dim 0 : vector<8x32xf32>, i32 -> vector<8x32xf32>
    %c1_i32_7 = arith.constant 1 : i32
    %8 = vector.broadcast %c1_i32_7 : i32 to vector<8x1xi32>
    %9 = arith.cmpi sge, %4, %8 : vector<8x1xi32>
    %cst = arith.constant 0.000000e+00 : f32
    %10 = vector.shape_cast %9 : vector<8x1xi1> to vector<8x1xi1>
    %11 = vector.broadcast %10 : vector<8x1xi1> to vector<8x32xi1>
    %12 = vector.broadcast %cst : f32 to vector<8x32xf32>
    %13 = arith.select %11, %7, %12 : vector<8x32xi1>, vector<8x32xf32>
    %c7_i32 = arith.constant 7 : i32
    %14 = tpu.dynamic_rotate %1 by %c7_i32 dim 0 : vector<8x32xf32>, i32 -> vector<8x32xf32>
    %c7_i32_8 = arith.constant 7 : i32
    %15 = vector.broadcast %c7_i32_8 : i32 to vector<8x1xi32>
    %16 = arith.cmpi slt, %4, %15 : vector<8x1xi32>
    %cst_9 = arith.constant 0.000000e+00 : f32
    %17 = vector.shape_cast %16 : vector<8x1xi1> to vector<8x1xi1>
    %18 = vector.broadcast %17 : vector<8x1xi1> to vector<8x32xi1>
    %19 = vector.broadcast %cst_9 : f32 to vector<8x32xf32>
    %20 = arith.select %18, %14, %19 : vector<8x32xi1>, vector<8x32xf32>
    %21 = tpu.concatenate %13, %1, %20 in 1 : vector<8x32xf32>, vector<8x32xf32>, vector<8x32xf32> -> vector<8x96xf32>
    %22 = arith.truncf %21 : vector<8x96xf32> to vector<8x96xbf16>
    %23 = vector.extract_strided_slice %6 {offsets = [0, 0], sizes = [96, 64], strides = [1, 1]} : vector<97x64xf32> to vector<96x64xf32>
    %24 = arith.truncf %23 : vector<96x64xf32> to vector<96x64xbf16>
    %cst_10 = arith.constant dense<0.000000e+00> : vector<8x64xf32>
    %25 = tpu.matmul %22, %24, %cst_10 {dimension_numbers = #tpu.dot_dimension_numbers<[1], [0], [0], [1], [0, 0, 1, 1], [], []>} : vector<8x96xbf16>, vector<96x64xbf16>, vector<8x64xf32> -> vector<8x64xf32>
    %26 = vector.extract_strided_slice %6 {offsets = [96, 0], sizes = [1, 64], strides = [1, 1]} : vector<97x64xf32> to vector<1x64xf32>
    %27 = vector.broadcast %26 : vector<1x64xf32> to vector<8x64xf32>
    %28 = arith.addf %25, %27 : vector<8x64xf32>
    %29 = vector.extract_strided_slice %28 {offsets = [0, 0], sizes = [8, 32], strides = [1, 1]} : vector<8x64xf32> to vector<8x32xf32>
    %30 = vector.extract_strided_slice %28 {offsets = [0, 32], sizes = [8, 32], strides = [1, 1]} : vector<8x64xf32> to vector<8x32xf32>
    %31 = arith.negf %30 : vector<8x32xf32>
    %32 = math.exp %31 : vector<8x32xf32>
    %cst_11 = arith.constant 1.000000e+00 : f32
    %33 = vector.broadcast %cst_11 : f32 to vector<8x32xf32>
    %34 = arith.addf %33, %32 : vector<8x32xf32>
    %35 = arith.divf %33, %34 : vector<8x32xf32>
    %36 = arith.mulf %29, %35 : vector<8x32xf32>
    %37 = arith.addf %36, %1 : vector<8x32xf32>
    %cst_12 = arith.constant 0.707106769 : f32
    %38 = vector.broadcast %cst_12 : f32 to vector<8x32xf32>
    %39 = arith.mulf %37, %38 : vector<8x32xf32>
    %40 = arith.addf %39, %1 : vector<8x32xf32>
    %cst_13 = arith.constant 0.707106769 : f32
    %41 = vector.broadcast %cst_13 : f32 to vector<8x32xf32>
    %42 = arith.mulf %40, %41 : vector<8x32xf32>
    %c608 = arith.constant 608 : index
    %c0_14 = arith.constant 0 : index
    %43 = vector.load %arg3[%c608, %c0_14] : memref<624x128xf32, #tpu.memory_space<vmem>>, vector<8x32xf32>
    %44 = arith.addf %39, %43 : vector<8x32xf32>
    %c104 = arith.constant 104 : index
    %c0_15 = arith.constant 0 : index
    %45 = vector.load %arg3[%c104, %c0_15] : memref<624x128xf32, #tpu.memory_space<vmem>>, vector<17x32xf32>
    %46 = arith.truncf %3 : vector<8x16xf32> to vector<8x16xbf16>
    %47 = vector.extract_strided_slice %45 {offsets = [0, 0], sizes = [16, 32], strides = [1, 1]} : vector<17x32xf32> to vector<16x32xf32>
    %48 = arith.truncf %47 : vector<16x32xf32> to vector<16x32xbf16>
    %cst_16 = arith.constant dense<0.000000e+00> : vector<8x32xf32>
    %49 = tpu.matmul %46, %48, %cst_16 {dimension_numbers = #tpu.dot_dimension_numbers<[1], [0], [0], [1], [0, 0, 1, 1], [], []>} : vector<8x16xbf16>, vector<16x32xbf16>, vector<8x32xf32> -> vector<8x32xf32>
    %50 = vector.extract_strided_slice %45 {offsets = [16, 0], sizes = [1, 32], strides = [1, 1]} : vector<17x32xf32> to vector<1x32xf32>
    %51 = vector.broadcast %50 : vector<1x32xf32> to vector<8x32xf32>
    %52 = arith.addf %49, %51 : vector<8x32xf32>
    %cst_17 = arith.constant 0.000000e+00 : f32
    %53 = vector.broadcast %cst_17 : f32 to vector<8x32xf32>
    %54 = arith.maximumf %52, %53 : vector<8x32xf32>
    %c128 = arith.constant 128 : index
    %c0_18 = arith.constant 0 : index
    %55 = vector.load %arg3[%c128, %c0_18] : memref<624x128xf32, #tpu.memory_space<vmem>>, vector<97x64xf32>
    %c2_i32 = arith.constant 2 : i32
    %56 = tpu.dynamic_rotate %54 by %c2_i32 dim 0 : vector<8x32xf32>, i32 -> vector<8x32xf32>
    %c2_i32_19 = arith.constant 2 : i32
    %57 = vector.broadcast %c2_i32_19 : i32 to vector<8x1xi32>
    %58 = arith.cmpi sge, %5, %57 : vector<8x1xi32>
    %cst_20 = arith.constant 0.000000e+00 : f32
    %59 = vector.shape_cast %58 : vector<8x1xi1> to vector<8x1xi1>
    %60 = vector.broadcast %59 : vector<8x1xi1> to vector<8x32xi1>
    %61 = vector.broadcast %cst_20 : f32 to vector<8x32xf32>
    %62 = arith.select %60, %56, %61 : vector<8x32xi1>, vector<8x32xf32>
    %c1_i32_21 = arith.constant 1 : i32
    %63 = tpu.dynamic_rotate %54 by %c1_i32_21 dim 0 : vector<8x32xf32>, i32 -> vector<8x32xf32>
    %c1_i32_22 = arith.constant 1 : i32
    %64 = vector.broadcast %c1_i32_22 : i32 to vector<8x1xi32>
    %65 = arith.cmpi sge, %5, %64 : vector<8x1xi32>
    %cst_23 = arith.constant 0.000000e+00 : f32
    %66 = vector.shape_cast %65 : vector<8x1xi1> to vector<8x1xi1>
    %67 = vector.broadcast %66 : vector<8x1xi1> to vector<8x32xi1>
    %68 = vector.broadcast %cst_23 : f32 to vector<8x32xf32>
    %69 = arith.select %67, %63, %68 : vector<8x32xi1>, vector<8x32xf32>
    %70 = tpu.concatenate %62, %69, %54 in 1 : vector<8x32xf32>, vector<8x32xf32>, vector<8x32xf32> -> vector<8x96xf32>
    %71 = arith.truncf %70 : vector<8x96xf32> to vector<8x96xbf16>
    %72 = vector.extract_strided_slice %55 {offsets = [0, 0], sizes = [96, 64], strides = [1, 1]} : vector<97x64xf32> to vector<96x64xf32>
    %73 = arith.truncf %72 : vector<96x64xf32> to vector<96x64xbf16>
    %cst_24 = arith.constant dense<0.000000e+00> : vector<8x64xf32>
    %74 = tpu.matmul %71, %73, %cst_24 {dimension_numbers = #tpu.dot_dimension_numbers<[1], [0], [0], [1], [0, 0, 1, 1], [], []>} : vector<8x96xbf16>, vector<96x64xbf16>, vector<8x64xf32> -> vector<8x64xf32>
    %75 = vector.extract_strided_slice %55 {offsets = [96, 0], sizes = [1, 64], strides = [1, 1]} : vector<97x64xf32> to vector<1x64xf32>
    %76 = vector.broadcast %75 : vector<1x64xf32> to vector<8x64xf32>
    %77 = arith.addf %74, %76 : vector<8x64xf32>
    %78 = vector.extract_strided_slice %77 {offsets = [0, 0], sizes = [8, 32], strides = [1, 1]} : vector<8x64xf32> to vector<8x32xf32>
    %79 = vector.extract_strided_slice %77 {offsets = [0, 32], sizes = [8, 32], strides = [1, 1]} : vector<8x64xf32> to vector<8x32xf32>
    %80 = arith.negf %79 : vector<8x32xf32>
    %81 = math.exp %80 : vector<8x32xf32>
    %cst_25 = arith.constant 1.000000e+00 : f32
    %82 = vector.broadcast %cst_25 : f32 to vector<8x32xf32>
    %83 = arith.addf %82, %81 : vector<8x32xf32>
    %84 = arith.divf %82, %83 : vector<8x32xf32>
    %85 = arith.mulf %78, %84 : vector<8x32xf32>
    %86 = arith.addf %85, %54 : vector<8x32xf32>
    %cst_26 = arith.constant 0.707106769 : f32
    %87 = vector.broadcast %cst_26 : f32 to vector<8x32xf32>
    %88 = arith.mulf %86, %87 : vector<8x32xf32>
    %c232 = arith.constant 232 : index
    %c0_27 = arith.constant 0 : index
    %89 = vector.load %arg3[%c232, %c0_27] : memref<624x128xf32, #tpu.memory_space<vmem>>, vector<97x64xf32>
    %c2_i32_28 = arith.constant 2 : i32
    %90 = tpu.dynamic_rotate %88 by %c2_i32_28 dim 0 : vector<8x32xf32>, i32 -> vector<8x32xf32>
    %c2_i32_29 = arith.constant 2 : i32
    %91 = vector.broadcast %c2_i32_29 : i32 to vector<8x1xi32>
    %92 = arith.cmpi sge, %5, %91 : vector<8x1xi32>
    %cst_30 = arith.constant 0.000000e+00 : f32
    %93 = vector.shape_cast %92 : vector<8x1xi1> to vector<8x1xi1>
    %94 = vector.broadcast %93 : vector<8x1xi1> to vector<8x32xi1>
    %95 = vector.broadcast %cst_30 : f32 to vector<8x32xf32>
    %96 = arith.select %94, %90, %95 : vector<8x32xi1>, vector<8x32xf32>
    %c1_i32_31 = arith.constant 1 : i32
    %97 = tpu.dynamic_rotate %88 by %c1_i32_31 dim 0 : vector<8x32xf32>, i32 -> vector<8x32xf32>
    %c1_i32_32 = arith.constant 1 : i32
    %98 = vector.broadcast %c1_i32_32 : i32 to vector<8x1xi32>
    %99 = arith.cmpi sge, %5, %98 : vector<8x1xi32>
    %cst_33 = arith.constant 0.000000e+00 : f32
    %100 = vector.shape_cast %99 : vector<8x1xi1> to vector<8x1xi1>
    %101 = vector.broadcast %100 : vector<8x1xi1> to vector<8x32xi1>
    %102 = vector.broadcast %cst_33 : f32 to vector<8x32xf32>
    %103 = arith.select %101, %97, %102 : vector<8x32xi1>, vector<8x32xf32>
    %104 = tpu.concatenate %96, %103, %88 in 1 : vector<8x32xf32>, vector<8x32xf32>, vector<8x32xf32> -> vector<8x96xf32>
    %105 = arith.truncf %104 : vector<8x96xf32> to vector<8x96xbf16>
    %106 = vector.extract_strided_slice %89 {offsets = [0, 0], sizes = [96, 64], strides = [1, 1]} : vector<97x64xf32> to vector<96x64xf32>
    %107 = arith.truncf %106 : vector<96x64xf32> to vector<96x64xbf16>
    %cst_34 = arith.constant dense<0.000000e+00> : vector<8x64xf32>
    %108 = tpu.matmul %105, %107, %cst_34 {dimension_numbers = #tpu.dot_dimension_numbers<[1], [0], [0], [1], [0, 0, 1, 1], [], []>} : vector<8x96xbf16>, vector<96x64xbf16>, vector<8x64xf32> -> vector<8x64xf32>
    %109 = vector.extract_strided_slice %89 {offsets = [96, 0], sizes = [1, 64], strides = [1, 1]} : vector<97x64xf32> to vector<1x64xf32>
    %110 = vector.broadcast %109 : vector<1x64xf32> to vector<8x64xf32>
    %111 = arith.addf %108, %110 : vector<8x64xf32>
    %112 = vector.extract_strided_slice %111 {offsets = [0, 0], sizes = [8, 32], strides = [1, 1]} : vector<8x64xf32> to vector<8x32xf32>
    %113 = vector.extract_strided_slice %111 {offsets = [0, 32], sizes = [8, 32], strides = [1, 1]} : vector<8x64xf32> to vector<8x32xf32>
    %114 = arith.negf %113 : vector<8x32xf32>
    %115 = math.exp %114 : vector<8x32xf32>
    %cst_35 = arith.constant 1.000000e+00 : f32
    %116 = vector.broadcast %cst_35 : f32 to vector<8x32xf32>
    %117 = arith.addf %116, %115 : vector<8x32xf32>
    %118 = arith.divf %116, %117 : vector<8x32xf32>
    %119 = arith.mulf %112, %118 : vector<8x32xf32>
    %120 = arith.addf %119, %88 : vector<8x32xf32>
    %cst_36 = arith.constant 0.707106769 : f32
    %121 = vector.broadcast %cst_36 : f32 to vector<8x32xf32>
    %122 = arith.mulf %120, %121 : vector<8x32xf32>
    %c616 = arith.constant 616 : index
    %c0_37 = arith.constant 0 : index
    %123 = vector.load %arg3[%c616, %c0_37] : memref<624x128xf32, #tpu.memory_space<vmem>>, vector<8x32xf32>
    %124 = arith.addf %122, %123 : vector<8x32xf32>
    %c336 = arith.constant 336 : index
    %c0_38 = arith.constant 0 : index
    %125 = vector.load %arg3[%c336, %c0_38] : memref<624x128xf32, #tpu.memory_space<vmem>>, vector<33x32xf32>
    %126 = arith.truncf %124 : vector<8x32xf32> to vector<8x32xbf16>
    %127 = vector.extract_strided_slice %125 {offsets = [0, 0], sizes = [32, 32], strides = [1, 1]} : vector<33x32xf32> to vector<32x32xf32>
    %128 = arith.truncf %127 : vector<32x32xf32> to vector<32x32xbf16>
    %cst_39 = arith.constant dense<0.000000e+00> : vector<8x32xf32>
    %129 = tpu.matmul %126, %128, %cst_39 {dimension_numbers = #tpu.dot_dimension_numbers<[1], [0], [0], [1], [0, 0, 1, 1], [], []>} : vector<8x32xbf16>, vector<32x32xbf16>, vector<8x32xf32> -> vector<8x32xf32>
    %130 = vector.extract_strided_slice %125 {offsets = [32, 0], sizes = [1, 32], strides = [1, 1]} : vector<33x32xf32> to vector<1x32xf32>
    %131 = vector.broadcast %130 : vector<1x32xf32> to vector<8x32xf32>
    %132 = arith.addf %129, %131 : vector<8x32xf32>
    %133 = arith.truncf %132 : vector<8x32xf32> to vector<8x32xbf16>
    %134 = arith.truncf %44 : vector<8x32xf32> to vector<8x32xbf16>
    %cst_40 = arith.constant dense<0.000000e+00> : vector<8x8xf32>
    %135 = tpu.matmul %133, %134, %cst_40 {dimension_numbers = #tpu.dot_dimension_numbers<[1], [1], [0], [0], [0, 0, 1, 0], [], []>} : vector<8x32xbf16>, vector<8x32xbf16>, vector<8x8xf32> -> vector<8x8xf32>
    %cst_41 = arith.constant dense<0xFF800000> : vector<8xf32>
    %136 = vector.multi_reduction <maximumf>, %135, %cst_41 [1] : vector<8x8xf32> to vector<8xf32>
    %137 = vector.shape_cast %136 : vector<8xf32> to vector<8x1xf32>
    %138 = vector.broadcast %137 : vector<8x1xf32> to vector<8x8xf32>
    %139 = arith.subf %135, %138 : vector<8x8xf32>
    %140 = math.exp %139 : vector<8x8xf32>
    %cst_42 = arith.constant dense<0.000000e+00> : vector<8xf32>
    %141 = vector.multi_reduction <add>, %140, %cst_42 [1] : vector<8x8xf32> to vector<8xf32>
    %142 = vector.shape_cast %141 : vector<8xf32> to vector<8x1xf32>
    %143 = tpu.reciprocal %142 {approx = true} : vector<8x1xf32> -> vector<8x1xf32>
    %144 = vector.broadcast %143 : vector<8x1xf32> to vector<8x8xf32>
    %145 = arith.mulf %140, %144 : vector<8x8xf32>
    %146 = arith.truncf %145 : vector<8x8xf32> to vector<8x8xbf16>
    %147 = arith.truncf %42 : vector<8x32xf32> to vector<8x32xbf16>
    %cst_43 = arith.constant dense<0.000000e+00> : vector<8x32xf32>
    %148 = tpu.matmul %146, %147, %cst_43 {dimension_numbers = #tpu.dot_dimension_numbers<[1], [0], [0], [1], [0, 0, 1, 1], [], []>} : vector<8x8xbf16>, vector<8x32xbf16>, vector<8x32xf32> -> vector<8x32xf32>
    %c376 = arith.constant 376 : index
    %c0_44 = arith.constant 0 : index
    %149 = vector.load %arg3[%c376, %c0_44] : memref<624x128xf32, #tpu.memory_space<vmem>>, vector<33x32xf32>
    %150 = arith.truncf %148 : vector<8x32xf32> to vector<8x32xbf16>
    %151 = vector.extract_strided_slice %149 {offsets = [0, 0], sizes = [32, 32], strides = [1, 1]} : vector<33x32xf32> to vector<32x32xf32>
    %152 = arith.truncf %151 : vector<32x32xf32> to vector<32x32xbf16>
    %cst_45 = arith.constant dense<0.000000e+00> : vector<8x32xf32>
    %153 = tpu.matmul %150, %152, %cst_45 {dimension_numbers = #tpu.dot_dimension_numbers<[1], [0], [0], [1], [0, 0, 1, 1], [], []>} : vector<8x32xbf16>, vector<32x32xbf16>, vector<8x32xf32> -> vector<8x32xf32>
    %154 = vector.extract_strided_slice %149 {offsets = [32, 0], sizes = [1, 32], strides = [1, 1]} : vector<33x32xf32> to vector<1x32xf32>
    %155 = vector.broadcast %154 : vector<1x32xf32> to vector<8x32xf32>
    %156 = arith.addf %153, %155 : vector<8x32xf32>
    %157 = arith.addf %156, %124 : vector<8x32xf32>
    %cst_46 = arith.constant 0.707106769 : f32
    %158 = vector.broadcast %cst_46 : f32 to vector<8x32xf32>
    %159 = arith.mulf %157, %158 : vector<8x32xf32>
    %c416 = arith.constant 416 : index
    %c0_47 = arith.constant 0 : index
    %160 = vector.load %arg3[%c416, %c0_47] : memref<624x128xf32, #tpu.memory_space<vmem>>, vector<33x16xf32>
    %161 = arith.truncf %159 : vector<8x32xf32> to vector<8x32xbf16>
    %162 = vector.extract_strided_slice %160 {offsets = [0, 0], sizes = [32, 16], strides = [1, 1]} : vector<33x16xf32> to vector<32x16xf32>
    %163 = arith.truncf %162 : vector<32x16xf32> to vector<32x16xbf16>
    %cst_48 = arith.constant dense<0.000000e+00> : vector<8x16xf32>
    %164 = tpu.matmul %161, %163, %cst_48 {dimension_numbers = #tpu.dot_dimension_numbers<[1], [0], [0], [1], [0, 0, 1, 1], [], []>} : vector<8x32xbf16>, vector<32x16xbf16>, vector<8x16xf32> -> vector<8x16xf32>
    %165 = vector.extract_strided_slice %160 {offsets = [32, 0], sizes = [1, 16], strides = [1, 1]} : vector<33x16xf32> to vector<1x16xf32>
    %166 = vector.broadcast %165 : vector<1x16xf32> to vector<8x16xf32>
    %167 = arith.addf %164, %166 : vector<8x16xf32>
    %168 = arith.negf %167 : vector<8x16xf32>
    %169 = math.exp %168 : vector<8x16xf32>
    %cst_49 = arith.constant 1.000000e+00 : f32
    %170 = vector.broadcast %cst_49 : f32 to vector<8x16xf32>
    %171 = arith.addf %170, %169 : vector<8x16xf32>
    %172 = arith.divf %170, %171 : vector<8x16xf32>
    %c456 = arith.constant 456 : index
    %c0_50 = arith.constant 0 : index
    %173 = vector.load %arg3[%c456, %c0_50] : memref<624x128xf32, #tpu.memory_space<vmem>>, vector<2x16xf32>
    %174 = vector.extract_strided_slice %173 {offsets = [0, 0], sizes = [1, 16], strides = [1, 1]} : vector<2x16xf32> to vector<1x16xf32>
    %175 = vector.broadcast %174 : vector<1x16xf32> to vector<8x16xf32>
    %176 = arith.mulf %167, %175 : vector<8x16xf32>
    %cst_51 = arith.constant dense<0.000000e+00> : vector<8xf32>
    %177 = vector.multi_reduction <add>, %176, %cst_51 [1] : vector<8x16xf32> to vector<8xf32>
    %178 = vector.shape_cast %177 : vector<8xf32> to vector<8x1xf32>
    %179 = vector.extract_strided_slice %173 {offsets = [1, 0], sizes = [1, 1], strides = [1, 1]} : vector<2x16xf32> to vector<1x1xf32>
    %180 = vector.broadcast %179 : vector<1x1xf32> to vector<8x1xf32>
    %181 = arith.addf %178, %180 : vector<8x1xf32>
    %182 = arith.negf %181 : vector<8x1xf32>
    %183 = math.exp %182 : vector<8x1xf32>
    %cst_52 = arith.constant 1.000000e+00 : f32
    %184 = vector.broadcast %cst_52 : f32 to vector<8x1xf32>
    %185 = arith.addf %184, %183 : vector<8x1xf32>
    %186 = arith.divf %184, %185 : vector<8x1xf32>
    %c464 = arith.constant 464 : index
    %c0_53 = arith.constant 0 : index
    %187 = vector.load %arg3[%c464, %c0_53] : memref<624x128xf32, #tpu.memory_space<vmem>>, vector<97x64xf32>
    %c1_i32_54 = arith.constant 1 : i32
    %188 = tpu.dynamic_rotate %159 by %c1_i32_54 dim 0 : vector<8x32xf32>, i32 -> vector<8x32xf32>
    %c1_i32_55 = arith.constant 1 : i32
    %189 = vector.broadcast %c1_i32_55 : i32 to vector<8x1xi32>
    %190 = arith.cmpi sge, %5, %189 : vector<8x1xi32>
    %cst_56 = arith.constant 0.000000e+00 : f32
    %191 = vector.shape_cast %190 : vector<8x1xi1> to vector<8x1xi1>
    %192 = vector.broadcast %191 : vector<8x1xi1> to vector<8x32xi1>
    %193 = vector.broadcast %cst_56 : f32 to vector<8x32xf32>
    %194 = arith.select %192, %188, %193 : vector<8x32xi1>, vector<8x32xf32>
    %c7_i32_57 = arith.constant 7 : i32
    %195 = tpu.dynamic_rotate %159 by %c7_i32_57 dim 0 : vector<8x32xf32>, i32 -> vector<8x32xf32>
    %c7_i32_58 = arith.constant 7 : i32
    %196 = vector.broadcast %c7_i32_58 : i32 to vector<8x1xi32>
    %197 = arith.cmpi slt, %5, %196 : vector<8x1xi32>
    %cst_59 = arith.constant 0.000000e+00 : f32
    %198 = vector.shape_cast %197 : vector<8x1xi1> to vector<8x1xi1>
    %199 = vector.broadcast %198 : vector<8x1xi1> to vector<8x32xi1>
    %200 = vector.broadcast %cst_59 : f32 to vector<8x32xf32>
    %201 = arith.select %199, %195, %200 : vector<8x32xi1>, vector<8x32xf32>
    %202 = tpu.concatenate %194, %159, %201 in 1 : vector<8x32xf32>, vector<8x32xf32>, vector<8x32xf32> -> vector<8x96xf32>
    %203 = arith.truncf %202 : vector<8x96xf32> to vector<8x96xbf16>
    %204 = vector.extract_strided_slice %187 {offsets = [0, 0], sizes = [96, 64], strides = [1, 1]} : vector<97x64xf32> to vector<96x64xf32>
    %205 = arith.truncf %204 : vector<96x64xf32> to vector<96x64xbf16>
    %cst_60 = arith.constant dense<0.000000e+00> : vector<8x64xf32>
    %206 = tpu.matmul %203, %205, %cst_60 {dimension_numbers = #tpu.dot_dimension_numbers<[1], [0], [0], [1], [0, 0, 1, 1], [], []>} : vector<8x96xbf16>, vector<96x64xbf16>, vector<8x64xf32> -> vector<8x64xf32>
    %207 = vector.extract_strided_slice %187 {offsets = [96, 0], sizes = [1, 64], strides = [1, 1]} : vector<97x64xf32> to vector<1x64xf32>
    %208 = vector.broadcast %207 : vector<1x64xf32> to vector<8x64xf32>
    %209 = arith.addf %206, %208 : vector<8x64xf32>
    %210 = vector.extract_strided_slice %209 {offsets = [0, 0], sizes = [8, 32], strides = [1, 1]} : vector<8x64xf32> to vector<8x32xf32>
    %211 = vector.extract_strided_slice %209 {offsets = [0, 32], sizes = [8, 32], strides = [1, 1]} : vector<8x64xf32> to vector<8x32xf32>
    %212 = arith.negf %211 : vector<8x32xf32>
    %213 = math.exp %212 : vector<8x32xf32>
    %cst_61 = arith.constant 1.000000e+00 : f32
    %214 = vector.broadcast %cst_61 : f32 to vector<8x32xf32>
    %215 = arith.addf %214, %213 : vector<8x32xf32>
    %216 = arith.divf %214, %215 : vector<8x32xf32>
    %217 = arith.mulf %210, %216 : vector<8x32xf32>
    %218 = arith.addf %217, %159 : vector<8x32xf32>
    %cst_62 = arith.constant 0.707106769 : f32
    %219 = vector.broadcast %cst_62 : f32 to vector<8x32xf32>
    %220 = arith.mulf %218, %219 : vector<8x32xf32>
    %c568 = arith.constant 568 : index
    %c0_63 = arith.constant 0 : index
    %221 = vector.load %arg3[%c568, %c0_63] : memref<624x128xf32, #tpu.memory_space<vmem>>, vector<33x64xf32>
    %222 = arith.truncf %220 : vector<8x32xf32> to vector<8x32xbf16>
    %223 = vector.extract_strided_slice %221 {offsets = [0, 0], sizes = [32, 64], strides = [1, 1]} : vector<33x64xf32> to vector<32x64xf32>
    %224 = arith.truncf %223 : vector<32x64xf32> to vector<32x64xbf16>
    %cst_64 = arith.constant dense<0.000000e+00> : vector<8x64xf32>
    %225 = tpu.matmul %222, %224, %cst_64 {dimension_numbers = #tpu.dot_dimension_numbers<[1], [0], [0], [1], [0, 0, 1, 1], [], []>} : vector<8x32xbf16>, vector<32x64xbf16>, vector<8x64xf32> -> vector<8x64xf32>
    %226 = vector.extract_strided_slice %221 {offsets = [32, 0], sizes = [1, 64], strides = [1, 1]} : vector<33x64xf32> to vector<1x64xf32>
    %227 = vector.broadcast %226 : vector<1x64xf32> to vector<8x64xf32>
    %228 = arith.addf %225, %227 : vector<8x64xf32>
    %229 = arith.negf %228 : vector<8x64xf32>
    %230 = math.exp %229 : vector<8x64xf32>
    %cst_65 = arith.constant 1.000000e+00 : f32
    %231 = vector.broadcast %cst_65 : f32 to vector<8x64xf32>
    %232 = arith.addf %231, %230 : vector<8x64xf32>
    %233 = arith.divf %231, %232 : vector<8x64xf32>
    %cst_66 = arith.constant 0.000000e+00 : f32
    %234 = vector.broadcast %cst_66 : f32 to vector<8x15xf32>
    %cst_67 = arith.constant 0.000000e+00 : f32
    %235 = vector.broadcast %cst_67 : f32 to vector<8x24xf32>
    %236 = tpu.concatenate %172, %186, %234, %233, %145, %235 in 1 : vector<8x16xf32>, vector<8x1xf32>, vector<8x15xf32>, vector<8x64xf32>, vector<8x8xf32>, vector<8x24xf32> -> vector<8x128xf32>
    %c0_68 = arith.constant 0 : index
    %c0_69 = arith.constant 0 : index
    %c0_70 = arith.constant 0 : index
    %237 = vector.load %arg4[%c0_68, %c0_69, %c0_70] : memref<1x8x128xf32, #tpu.memory_space<vmem>>, vector<1x8x128xf32>
    %238 = vector.shape_cast %237 : vector<1x8x128xf32> to vector<8x128xf32>
    %239 = vector.shape_cast %236 : vector<8x128xf32> to vector<1x8x128xf32>
    tpu.vector_store %arg4[%c0_68, %c0_69, %c0_70], %239 {strides = array<i32>} : memref<1x8x128xf32, #tpu.memory_space<vmem>>, vector<1x8x128xf32>,
    return
  }
  func.func @transform_0(%arg0: i32) -> (i32, i32, i32) {
    %c0_i32 = arith.constant 0 : i32
    %c0_i32_0 = arith.constant 0 : i32
    %c0_i32_1 = arith.constant 0 : i32
    return %arg0, %c0_i32, %c0_i32_0 : i32, i32, i32
  }
  func.func @transform_1(%arg0: i32) -> (i32, i32, i32) {
    %c0_i32 = arith.constant 0 : i32
    %c0_i32_0 = arith.constant 0 : i32
    %c0_i32_1 = arith.constant 0 : i32
    return %arg0, %c0_i32, %c0_i32_0 : i32, i32, i32
  }
  func.func @transform_2(%arg0: i32) -> (i32, i32) {
    %c0_i32 = arith.constant 0 : i32
    %c0_i32_0 = arith.constant 0 : i32
    %c0_i32_1 = arith.constant 0 : i32
    return %c0_i32, %c0_i32_0 : i32, i32
  }
  func.func @transform_3(%arg0: i32) -> (i32, i32, i32) {
    %c0_i32 = arith.constant 0 : i32
    %c0_i32_0 = arith.constant 0 : i32
    %c0_i32_1 = arith.constant 0 : i32
    return %arg0, %c0_i32, %c0_i32_0 : i32, i32, i32
  }
}

</mosaic_0001>

<llo_original>
// kernel: deepvoice3_forward.1
$region0: #{deepvoice3_forward.1}
  #allocation0 [shape = 'u32[]', space=smem, size = 0x4, offset = 0x4, fixed_abs, tag = 'smem constant byte address 0x4 - core index']
  #allocation1 [shape = 'u32[144,128]{1,0:T(1,128)}', space=vmem, size = 0x12000, scoped, tag = 'internal scratch']
  %s0 = inlined_call_operand.vmem [shape: f32[2,8,32], index: 0, kind: input, shape index: {}]
  %s1 = inlined_call_operand.vmem [shape: f32[2,8,16], index: 1, kind: input, shape index: {}]
  %s2 = inlined_call_operand.vmem [shape: f32[624,128], index: 2, kind: input, shape index: {}]
  %s3 = inlined_call_operand.vmem [shape: f32[2,8,128], index: 3, kind: output, shape index: {}]
  %s4 = sld [smem:[#allocation0]]
  $region45: #{deepvoice3_forward.1} parent=0
    _
  %s6 = ssub.s32 1, %s4
  %s7 = scalar_select 0, %s6, %s4
  loop: start=0, step=1, limit=4
  $region2: #{deepvoice3_forward.1} parent=0 // loop_pre_header
    _
  $region3: #{deepvoice3_forward.1} parent=0 // loop_header
    %s9 = sphi 0, %s13
    %p10 = scmp.ge.s32.totalorder %s9, 4
    %s19 = sphi 0, %s21
    %s22 = sphi 0, %s19
    %s23 = sphi 0, %s22
    %s39 = sphi 0, %s23
    %s45 = sphi 0, %s47
    %s48 = sphi 0, %s45
    %s49 = sphi 0, %s48
    %s65 = sphi 0, %s49
    %s69 = sphi 0, %s69
    %s71 = sphi 0, %s69
    %s72 = sphi 0, %s71
    %s86 = sphi 0, %s72
    %s92 = sphi 0, %s94
    %s95 = sphi 0, %s92
    %s96 = sphi 0, %s95
    %s112 = sphi 0, %s96
  $region4: #{deepvoice3_forward.1} parent=0 // loop_header_branch
    %12 = sbr.rel (%p10) target = $region8
  $region5: #{deepvoice3_forward.1} parent=0 // loop_body
    %s14 = ssub.s32 %s9, 1
    %s15 = ssub.s32 %s9, 2
    %s16 = sadd.s32 %s9, 1
    %s17 = ssub.s32 %s9, %s16
    %p18 = scmp.eq.s32.totalorder %s17, 0
    %s20 = sadd.s32 %s19, 1
    %s21 = scalar_select %p18, %s19, %s20
    %p24 = pneg %p18
    %p25 = scmp.eq.s32.totalorder %s9, 1
    %p26 = por %p24, %p25
    %p27 = scmp.ne.s32.totalorder %s19, %s22
    %p28 = scmp.eq.s32.totalorder %s9, 0
    %p29 = por %p27, %p28
    %p30 = scmp.ne.s32.totalorder %s19, %s22
    %p31 = scmp.eq.s32.totalorder %s14, 1
    %p32 = por %p30, %p31
    %p33 = scmp.ne.s32.totalorder %s22, %s23
    %p34 = scmp.eq.s32.totalorder %s14, 0
    %p35 = por %p33, %p34
    %p36 = scmp.ne.s32.totalorder %s22, %s23
    %p37 = scmp.eq.s32.totalorder %s15, 1
    %p38 = por %p36, %p37
    %p40 = scmp.ne.s32.totalorder %s23, %s39
    %p41 = scmp.eq.s32.totalorder %s15, 0
    %p42 = por %p40, %p41
    %s43 = ssub.s32 %s9, %s16
    %p44 = scmp.eq.s32.totalorder %s43, 0
    %s46 = sadd.s32 %s45, 1
    %s47 = scalar_select %p44, %s45, %s46
    %p50 = pneg %p44
    %p51 = scmp.eq.s32.totalorder %s9, 1
    %p52 = por %p50, %p51
    %p53 = scmp.ne.s32.totalorder %s45, %s48
    %p54 = scmp.eq.s32.totalorder %s9, 0
    %p55 = por %p53, %p54
    %p56 = scmp.ne.s32.totalorder %s45, %s48
    %p57 = scmp.eq.s32.totalorder %s14, 1
    %p58 = por %p56, %p57
    %p59 = scmp.ne.s32.totalorder %s48, %s49
    %p60 = scmp.eq.s32.totalorder %s14, 0
    %p61 = por %p59, %p60
    %p62 = scmp.ne.s32.totalorder %s48, %s49
    %p63 = scmp.eq.s32.totalorder %s15, 1
    %p64 = por %p62, %p63
    %p66 = scmp.ne.s32.totalorder %s49, %s65
    %p67 = scmp.eq.s32.totalorder %s15, 0
    %p68 = por %p66, %p67
    %s70 = sadd.s32 %s69, 1
    %p73 = scmp.eq.s32.totalorder %s9, 1
    %p74 = scmp.ne.s32.totalorder %s69, %s71
    %p75 = scmp.eq.s32.totalorder %s9, 0
    %p76 = por %p74, %p75
    %p77 = scmp.ne.s32.totalorder %s69, %s71
    %p78 = scmp.eq.s32.totalorder %s14, 1
    %p79 = por %p77, %p78
    %p80 = scmp.ne.s32.totalorder %s71, %s72
    %p81 = scmp.eq.s32.totalorder %s14, 0
    %p82 = por %p80, %p81
    %p83 = scmp.ne.s32.totalorder %s71, %s72
    %p84 = scmp.eq.s32.totalorder %s15, 1
    %p85 = por %p83, %p84
    %p87 = scmp.ne.s32.totalorder %s72, %s86
    %p88 = scmp.eq.s32.totalorder %s15, 0
    %p89 = por %p87, %p88
    %s90 = ssub.s32 %s9, %s16
    %p91 = scmp.eq.s32.totalorder %s90, 0
    %s93 = sadd.s32 %s92, 1
    %s94 = scalar_select %p91, %s92, %s93
    %p97 = pneg %p91
    %p98 = scmp.eq.s32.totalorder %s9, 1
    %p99 = por %p97, %p98
    %p100 = scmp.ne.s32.totalorder %s92, %s95
    %p101 = scmp.eq.s32.totalorder %s9, 0
    %p102 = por %p100, %p101
    %p103 = scmp.ne.s32.totalorder %s92, %s95
    %p104 = scmp.eq.s32.totalorder %s14, 1
    %p105 = por %p103, %p104
    %p106 = scmp.ne.s32.totalorder %s95, %s96
    %p107 = scmp.eq.s32.totalorder %s14, 0
    %p108 = por %p106, %p107
    %p109 = scmp.ne.s32.totalorder %s95, %s96
    %p110 = scmp.eq.s32.totalorder %s15, 1
    %p111 = por %p109, %p110
    %p113 = scmp.ne.s32.totalorder %s96, %s112
    %p114 = scmp.eq.s32.totalorder %s15, 0
    %p115 = por %p113, %p114
    %p116 = scmp.le.s32.totalorder 1, %s9
    %p117 = scmp.lt.s32.totalorder %s9, 3
    %p118 = pnand %p116, %p117
    %p119 = pneg %p118
    // Predicated region
    $region9: #{deepvoice3_forward.1} parent=5 // pred_check
      _
    $region10: #{deepvoice3_forward.1} parent=5 // pred_check_branch
      %121 = sbr.rel (%p118) target = $region12
    $region11: #{deepvoice3_forward.1} parent=5 // pred_region
      %s122 = ssub.s32 %s9, 1
      // Predicated region
      $region13: #{deepvoice3_forward.1} parent=11 // pred_check
        %p123 = pneg %p82
      $region14: #{deepvoice3_forward.1} parent=11 // pred_check_branch
        %125 = sbr.rel (%p123) target = $region16
      $region15: #{deepvoice3_forward.1} parent=11 // pred_region
        _
      $region16: #{deepvoice3_forward.1} parent=11 // pred_fallthru
        _
    $region12: #{deepvoice3_forward.1} parent=5 // pred_fallthru
      _
    %p126 = scmp.lt.s32.totalorder %s9, 2
    // Predicated region
    $region17: #{deepvoice3_forward.1} parent=5 // pred_check
      %p127 = pneg %p126
    $region18: #{deepvoice3_forward.1} parent=5 // pred_check_branch
      %129 = sbr.rel (%p127) target = $region20
    $region19: #{deepvoice3_forward.1} parent=5 // pred_region
      // Predicated region
      $region21: #{deepvoice3_forward.1} parent=19 // pred_check
        %p130 = pneg %p29
      $region22: #{deepvoice3_forward.1} parent=19 // pred_check_branch
        %132 = sbr.rel (%p130) target = $region24
      $region23: #{deepvoice3_forward.1} parent=19 // pred_region
        %p133 = scmp.lt.s32.totalorder %s9, 1
        %s134 = scalar_select %p133, %s9, 1
        %s135 = smul.addr %s134, 8
        %s136 = scalar_lea.vmem %s0, %s135
      $region24: #{deepvoice3_forward.1} parent=19 // pred_fallthru
        _
      // Predicated region
      $region25: #{deepvoice3_forward.1} parent=19 // pred_check
        %p137 = pneg %p55
      $region26: #{deepvoice3_forward.1} parent=19 // pred_check_branch
        %139 = sbr.rel (%p137) target = $region28
      $region27: #{deepvoice3_forward.1} parent=19 // pred_region
        %p140 = scmp.lt.s32.totalorder %s9, 1
        %s141 = scalar_select %p140, %s9, 1
        %s142 = smul.addr %s141, 8
        %s143 = scalar_lea.vmem %s1, %s142
      $region28: #{deepvoice3_forward.1} parent=19 // pred_fallthru
        _
    $region20: #{deepvoice3_forward.1} parent=5 // pred_fallthru
      _
    %p144 = scmp.le.s32.totalorder 1, %s9
    %p145 = scmp.lt.s32.totalorder %s9, 3
    %p146 = pnand %p144, %p145
    %p147 = pneg %p146
    // Predicated region
    $region29: #{deepvoice3_forward.1} parent=5 // pred_check
      _
    $region30: #{deepvoice3_forward.1} parent=5 // pred_check_branch
      %149 = sbr.rel (%p146) target = $region32
    $region31: #{deepvoice3_forward.1} parent=5 // pred_region
      %s150 = ssub.s32 %s9, 1
      %p151 = scmp.lt.s32.totalorder %s14, 1
      %s152 = scalar_select %p151, %s14, 1
      %s153 = smul.addr %s152, 8
      %s154 = scalar_lea.vmem %s0, %s153
      %p155 = pneg %p35
      %p156 = pneg %p32
      %p157 = scmp.lt.s32.totalorder %s14, 1
      %s158 = scalar_select %p157, %s14, 1
      %s159 = smul.addr %s158, 8
      %s160 = scalar_lea.vmem %s1, %s159
      %p161 = pneg %p61
      %p162 = pneg %p58
      %p163 = pneg %p82
      %p164 = pneg %p79
      %p165 = pneg %p108
      %p166 = pneg %p105
      %p167 = scmp.lt.s32.totalorder %s14, 1
      %s168 = scalar_select %p167, %s14, 1
      %s169 = smul.addr %s168, 8
      %s170 = scalar_lea.vmem %s3, %s169
      %p171 = scmp.lt.s32.totalorder %s14, 1
      %s172 = scalar_select %p171, %s14, 1
      %s173 = smul.addr %s172, 8
      %s174 = scalar_lea.vmem %s0, %s173
      %p175 = scmp.lt.s32.totalorder %s14, 1
      %s176 = scalar_select %p175, %s14, 1
      %s177 = smul.addr %s176, 8
      %s178 = scalar_lea.vmem %s1, %s177
      %p179 = scmp.lt.s32.totalorder %s14, 1
      %s180 = scalar_select %p179, %s14, 1
      %s181 = smul.addr %s180, 8
      %s182 = scalar_lea.vmem %s3, %s181
      %v184 = vld [vmem:[%s174] sm:$0xff]
      %v185 = vld [vmem:[%s178] sm:$0xff]
      %v186 = vlaneseq
      %v187 = vshrl.u32 %v186, 7
      %v188 = vld [vmem:[%s2] sm:$0xff]
      %v189 = vld [vmem:[%s2 + $0x8] sm:$0xff]
      %v190 = vld [vmem:[%s2 + $0x10] sm:$0xff]
      %v191 = vld [vmem:[%s2 + $0x18] sm:$0xff]
      %v192 = vld [vmem:[%s2 + $0x20] sm:$0xff]
      %v193 = vld [vmem:[%s2 + $0x28] sm:$0xff]
      %v194 = vld [vmem:[%s2 + $0x30] sm:$0xff]
      %v195 = vld [vmem:[%s2 + $0x38] sm:$0xff]
      %v196 = vld [vmem:[%s2 + $0x40] sm:$0xff]
      %v197 = vld [vmem:[%s2 + $0x48] sm:$0xff]
      %v198 = vld [vmem:[%s2 + $0x50] sm:$0xff]
      %v199 = vld [vmem:[%s2 + $0x58] sm:$0xff]
      %v200 = vld [vmem:[%s2 + $0x60] sm:$0x1]
      %v201 = vrot.slane %v184, 7
      %vm202 = vcmp.ge.s32.totalorder %v187, 1
      %v203 = vsel %vm202, 1, 0
      %vm204 = vcmp.eq.s32.totalorder %v203, 1
      %v205 = vsel %vm204, %v201, 0.0
      %v206 = vrot.slane %v184, 1
      %vm207 = vcmp.lt.s32.totalorder %v187, 7
      %v208 = vsel %vm207, 1, 0
      %vm209 = vcmp.eq.s32.totalorder %v208, 1
      %v210 = vsel %vm209, %v206, 0.0
      %212 = vrot.lane.b32.xlu0 %v184, 32
      %v213 = vpop.permute.xlu0 %212
      %216 = vrot.lane.b32.xlu0 %v210, 64
      %v217 = vpop.permute.xlu0 %216
      %vm219 = vcmask 261120
      %v220 = vsel %vm219, %v205, %v213
      %vm221 = vcmask 523264
      %v222 = vsel %vm221, %v220, %v217
      %v223 = vpack.c.bf16 %v222, %v222
      %v224 = vpack.c.bf16 %v189, %v188
      %v225 = vpack.c.bf16 %v191, %v190
      %v226 = vpack.c.bf16 %v193, %v192
      %v227 = vpack.c.bf16 %v195, %v194
      %v228 = vpack.c.bf16 %v197, %v196
      %v229 = vpack.c.bf16 %v199, %v198
      %v230 = vlaneseq
      %v231 = vshrl.u32 %v230, 7
      %v232 = vsub.s32 0, %v231
      %v233 = vrot.slane %v200, %v232
      %vm234 = vcmask 785408
      %v236 = vsel %vm234, %v223, 0
      %238 = vmatprep.subr.bf16.mxu0 0
      %239 = vmatpush1.bf16.msra.mxu0 %v224
      %240 = vmatprep.subr.bf16.mxu0 0
      %241 = vmatpush1.bf16.msra.mxu0 %v225
      %242 = vmatprep.subr.bf16.mxu0 0
      %243 = vmatpush1.bf16.msra.mxu0 %v226
      %244 = vmatprep.subr.bf16.mxu0 0
      %245 = vmatpush1.bf16.msra.mxu0 %v227
      %246 = vmatprep.subr.bf16.mxu0 0
      %247 = vmatpush1.bf16.msra.mxu0 %v228
      %248 = vmatprep.subr.bf16.mxu0 0
      %249 = vmatpush1.bf16.msra.mxu0 %v229
      %250 = vmatprep.subr.bf16.mxu0 0
      %251 = vmatpush1.bf16.msra.mxu0 0
      %252 = vmatprep.subr.bf16.mxu0 0
      %253 = vmatpush1.bf16.msra.mxu0 0
      %254 = vmatprep.subr.bf16.mxu0 0
      %255 = vmatpush1.bf16.msra.mxu0 0
      %256 = vmatprep.subr.bf16.mxu0 0
      %257 = vmatpush1.bf16.msra.mxu0 0
      %258 = vmatprep.subr.bf16.mxu0 0
      %259 = vmatpush1.bf16.msra.mxu0 0
      %260 = vmatprep.subr.bf16.mxu0 0
      %261 = vmatpush1.bf16.msra.mxu0 0
      %262 = vmatprep.subr.bf16.mxu0 0
      %263 = vmatpush1.bf16.msra.mxu0 0
      %264 = vmatprep.subr.bf16.mxu0 0
      %265 = vmatpush1.bf16.msra.mxu0 0
      %266 = vmatprep.subr.bf16.mxu0 0
      %267 = vmatpush1.bf16.msra.mxu0 0
      %268 = vmatprep.subr.bf16.mxu0 0
      %269 = vmatpush1.bf16.msra.mxu0 0
      %270 = vmatprep.mubr.bf16.mxu0 0
      %271 = vmatmul.mubr.bf16.gmra.mrb[0].mxu0 %v236
      %v272 = vpop.f32.mrb[0].mxu0
      %v273 = vadd.f32 %v233, %v272
      %v274 = vpop.f32.mrb[0].mxu0
      %v275 = vpop.f32.mrb[0].mxu0
      %v276 = vpop.f32.mrb[0].mxu0
      %277 = vdwg.mxu0
      %v278 = vxor.u32 %v273, 2147483648
      %v279 = vmul.f32 %v278, 1.442695
      %v280 = vpow.pop %v279
      %v281 = vadd.f32 %v280, 1.0
      %v282 = vrcp.pop %v281
      %v283 = vmul.f32 1.0, %v282
      %285 = vrot.lane.b32.xlu0 %v283, 96
      %v286 = vpop.permute.xlu0 %285
      %v288 = vmul.f32 %v273, %v286
      %v289 = vadd.f32 %v288, %v184
      %v290 = vmul.f32 %v289, 0.70710677
      %v291 = vadd.f32 %v290, %v184
      %v292 = vmul.f32 %v291, 0.70710677
      %v293 = vld [vmem:[%s2 + $0x260] sm:$0xff]
      %v294 = vadd.f32 %v290, %v293
      %v295 = vld [vmem:[%s2 + $0x68] sm:$0xff]
      %v296 = vld [vmem:[%s2 + $0x70] sm:$0xff]
      %v297 = vld [vmem:[%s2 + $0x78] sm:$0x1]
      %v298 = vpack.c.bf16 %v185, %v185
      %v299 = vpack.c.bf16 %v296, %v295
      %v300 = vlaneseq
      %v301 = vshrl.u32 %v300, 7
      %v302 = vsub.s32 0, %v301
      %v303 = vrot.slane %v297, %v302
      %vm304 = vcmask 130048
      %v306 = vsel %vm304, %v298, 0
      %308 = vmatprep.subr.bf16.mxu0 0
      %309 = vmatpush1.bf16.msra.mxu0 %v299
      %310 = vmatprep.subr.bf16.mxu0 0
      %311 = vmatpush1.bf16.msra.mxu0 0
      %312 = vmatprep.subr.bf16.mxu0 0
      %313 = vmatpush1.bf16.msra.mxu0 0
      %314 = vmatprep.subr.bf16.mxu0 0
      %315 = vmatpush1.bf16.msra.mxu0 0
      %316 = vmatprep.subr.bf16.mxu0 0
      %317 = vmatpush1.bf16.msra.mxu0 0
      %318 = vmatprep.subr.bf16.mxu0 0
      %319 = vmatpush1.bf16.msra.mxu0 0
      %320 = vmatprep.subr.bf16.mxu0 0
      %321 = vmatpush1.bf16.msra.mxu0 0
      %322 = vmatprep.subr.bf16.mxu0 0
      %323 = vmatpush1.bf16.msra.mxu0 0
      %324 = vmatprep.subr.bf16.mxu0 0
      %325 = vmatpush1.bf16.msra.mxu0 0
      %326 = vmatprep.subr.bf16.mxu0 0
      %327 = vmatpush1.bf16.msra.mxu0 0
      %328 = vmatprep.subr.bf16.mxu0 0
      %329 = vmatpush1.bf16.msra.mxu0 0
      %330 = vmatprep.subr.bf16.mxu0 0
      %331 = vmatpush1.bf16.msra.mxu0 0
      %332 = vmatprep.subr.bf16.mxu0 0
      %333 = vmatpush1.bf16.msra.mxu0 0
      %334 = vmatprep.subr.bf16.mxu0 0
      %335 = vmatpush1.bf16.msra.mxu0 0
      %336 = vmatprep.subr.bf16.mxu0 0
      %337 = vmatpush1.bf16.msra.mxu0 0
      %338 = vmatprep.subr.bf16.mxu0 0
      %339 = vmatpush1.bf16.msra.mxu0 0
      %340 = vmatprep.mubr.bf16.mxu0 0
      %341 = vmatmul.mubr.bf16.gmra.mrb[0].mxu0 %v306
      %v342 = vpop.f32.mrb[0].mxu0
      %v343 = vadd.f32 %v303, %v342
      %v344 = vpop.f32.mrb[0].mxu0
      %v345 = vpop.f32.mrb[0].mxu0
      %v346 = vpop.f32.mrb[0].mxu0
      %347 = vdwg.mxu0
      %v348 = vmax.f32 %v343, 0.0
      %v349 = vld [vmem:[%s2 + $0x80] sm:$0xff]
      %v350 = vld [vmem:[%s2 + $0x88] sm:$0xff]
      %v351 = vld [vmem:[%s2 + $0x90] sm:$0xff]
      %v352 = vld [vmem:[%s2 + $0x98] sm:$0xff]
      %v353 = vld [vmem:[%s2 + $0xa0] sm:$0xff]
      %v354 = vld [vmem:[%s2 + $0xa8] sm:$0xff]
      %v355 = vld [vmem:[%s2 + $0xb0] sm:$0xff]
      %v356 = vld [vmem:[%s2 + $0xb8] sm:$0xff]
      %v357 = vld [vmem:[%s2 + $0xc0] sm:$0xff]
      %v358 = vld [vmem:[%s2 + $0xc8] sm:$0xff]
      %v359 = vld [vmem:[%s2 + $0xd0] sm:$0xff]
      %v360 = vld [vmem:[%s2 + $0xd8] sm:$0xff]
      %v361 = vld [vmem:[%s2 + $0xe0] sm:$0x1]
      %v362 = vrot.slane %v348, 6
      %vm363 = vcmp.ge.s32.totalorder %v187, 2
      %v364 = vsel %vm363, 1, 0
      %vm365 = vcmp.eq.s32.totalorder %v364, 1
      %v366 = vsel %vm365, %v362, 0.0
      %v367 = vrot.slane %v348, 7
      %v368 = vsel %vm204, %v367, 0.0
      %370 = vrot.lane.b32.xlu0 %v368, 32
      %v371 = vpop.permute.xlu0 %370
      %374 = vrot.lane.b32.xlu0 %v348, 64
      %v375 = vpop.permute.xlu0 %374
      %v377 = vsel %vm219, %v366, %v371
      %v378 = vsel %vm221, %v377, %v375
      %v379 = vpack.c.bf16 %v378, %v378
      %v380 = vpack.c.bf16 %v350, %v349
      %v381 = vpack.c.bf16 %v352, %v351
      %v382 = vpack.c.bf16 %v354, %v353
      %v383 = vpack.c.bf16 %v356, %v355
      %v384 = vpack.c.bf16 %v358, %v357
      %v385 = vpack.c.bf16 %v360, %v359
      %v386 = vlaneseq
      %v387 = vshrl.u32 %v386, 7
      %v388 = vsub.s32 0, %v387
      %v389 = vrot.slane %v361, %v388
      %v391 = vsel %vm234, %v379, 0
      %393 = vmatprep.subr.bf16.mxu0 0
      %394 = vmatpush1.bf16.msra.mxu0 %v380
      %395 = vmatprep.subr.bf16.mxu0 0
      %396 = vmatpush1.bf16.msra.mxu0 %v381
      %397 = vmatprep.subr.bf16.mxu0 0
      %398 = vmatpush1.bf16.msra.mxu0 %v382
      %399 = vmatprep.subr.bf16.mxu0 0
      %400 = vmatpush1.bf16.msra.mxu0 %v383
      %401 = vmatprep.subr.bf16.mxu0 0
      %402 = vmatpush1.bf16.msra.mxu0 %v384
      %403 = vmatprep.subr.bf16.mxu0 0
      %404 = vmatpush1.bf16.msra.mxu0 %v385
      %405 = vmatprep.subr.bf16.mxu0 0
      %406 = vmatpush1.bf16.msra.mxu0 0
      %407 = vmatprep.subr.bf16.mxu0 0
      %408 = vmatpush1.bf16.msra.mxu0 0
      %409 = vmatprep.subr.bf16.mxu0 0
      %410 = vmatpush1.bf16.msra.mxu0 0
      %411 = vmatprep.subr.bf16.mxu0 0
      %412 = vmatpush1.bf16.msra.mxu0 0
      %413 = vmatprep.subr.bf16.mxu0 0
      %414 = vmatpush1.bf16.msra.mxu0 0
      %415 = vmatprep.subr.bf16.mxu0 0
      %416 = vmatpush1.bf16.msra.mxu0 0
      %417 = vmatprep.subr.bf16.mxu0 0
      %418 = vmatpush1.bf16.msra.mxu0 0
      %419 = vmatprep.subr.bf16.mxu0 0
      %420 = vmatpush1.bf16.msra.mxu0 0
      %421 = vmatprep.subr.bf16.mxu0 0
      %422 = vmatpush1.bf16.msra.mxu0 0
      %423 = vmatprep.subr.bf16.mxu0 0
      %424 = vmatpush1.bf16.msra.mxu0 0
      %425 = vmatprep.mubr.bf16.mxu0 0
      %426 = vmatmul.mubr.bf16.gmra.mrb[0].mxu0 %v391
      %v427 = vpop.f32.mrb[0].mxu0
      %v428 = vadd.f32 %v389, %v427
      %v429 = vpop.f32.mrb[0].mxu0
      %v430 = vpop.f32.mrb[0].mxu0
      %v431 = vpop.f32.mrb[0].mxu0
      %432 = vdwg.mxu0
      %v433 = vxor.u32 %v428, 2147483648
      %v434 = vmul.f32 %v433, 1.442695
      %v435 = vpow.pop %v434
      %v436 = vadd.f32 %v435, 1.0
      %v437 = vrcp.pop %v436
      %v438 = vmul.f32 1.0, %v437
      %440 = vrot.lane.b32.xlu0 %v438, 96
      %v441 = vpop.permute.xlu0 %440
      %v443 = vmul.f32 %v428, %v441
      %v444 = vadd.f32 %v443, %v348
      %v445 = vmul.f32 %v444, 0.70710677
      %v446 = vld [vmem:[%s2 + $0xe8] sm:$0xff]
      %v447 = vld [vmem:[%s2 + $0xf0] sm:$0xff]
      %v448 = vld [vmem:[%s2 + $0xf8] sm:$0xff]
      %v449 = vld [vmem:[%s2 + $0x100] sm:$0xff]
      %v450 = vld [vmem:[%s2 + $0x108] sm:$0xff]
      %v451 = vld [vmem:[%s2 + $0x110] sm:$0xff]
      %v452 = vld [vmem:[%s2 + $0x118] sm:$0xff]
      %v453 = vld [vmem:[%s2 + $0x120] sm:$0xff]
      %v454 = vld [vmem:[%s2 + $0x128] sm:$0xff]
      %v455 = vld [vmem:[%s2 + $0x130] sm:$0xff]
      %v456 = vld [vmem:[%s2 + $0x138] sm:$0xff]
      %v457 = vld [vmem:[%s2 + $0x140] sm:$0xff]
      %v458 = vld [vmem:[%s2 + $0x148] sm:$0x1]
      %v459 = vrot.slane %v445, 6
      %v460 = vsel %vm365, %v459, 0.0
      %v461 = vrot.slane %v445, 7
      %v462 = vsel %vm204, %v461, 0.0
      %464 = vrot.lane.b32.xlu0 %v462, 32
      %v465 = vpop.permute.xlu0 %464
      %468 = vrot.lane.b32.xlu0 %v445, 64
      %v469 = vpop.permute.xlu0 %468
      %v471 = vsel %vm219, %v460, %v465
      %v472 = vsel %vm221, %v471, %v469
      %v473 = vpack.c.bf16 %v472, %v472
      %v474 = vpack.c.bf16 %v447, %v446
      %v475 = vpack.c.bf16 %v449, %v448
      %v476 = vpack.c.bf16 %v451, %v450
      %v477 = vpack.c.bf16 %v453, %v452
      %v478 = vpack.c.bf16 %v455, %v454
      %v479 = vpack.c.bf16 %v457, %v456
      %v480 = vlaneseq
      %v481 = vshrl.u32 %v480, 7
      %v482 = vsub.s32 0, %v481
      %v483 = vrot.slane %v458, %v482
      %v485 = vsel %vm234, %v473, 0
      %487 = vmatprep.subr.bf16.mxu0 0
      %488 = vmatpush1.bf16.msra.mxu0 %v474
      %489 = vmatprep.subr.bf16.mxu0 0
      %490 = vmatpush1.bf16.msra.mxu0 %v475
      %491 = vmatprep.subr.bf16.mxu0 0
      %492 = vmatpush1.bf16.msra.mxu0 %v476
      %493 = vmatprep.subr.bf16.mxu0 0
      %494 = vmatpush1.bf16.msra.mxu0 %v477
      %495 = vmatprep.subr.bf16.mxu0 0
      %496 = vmatpush1.bf16.msra.mxu0 %v478
      %497 = vmatprep.subr.bf16.mxu0 0
      %498 = vmatpush1.bf16.msra.mxu0 %v479
      %499 = vmatprep.subr.bf16.mxu0 0
      %500 = vmatpush1.bf16.msra.mxu0 0
      %501 = vmatprep.subr.bf16.mxu0 0
      %502 = vmatpush1.bf16.msra.mxu0 0
      %503 = vmatprep.subr.bf16.mxu0 0
      %504 = vmatpush1.bf16.msra.mxu0 0
      %505 = vmatprep.subr.bf16.mxu0 0
      %506 = vmatpush1.bf16.msra.mxu0 0
      %507 = vmatprep.subr.bf16.mxu0 0
      %508 = vmatpush1.bf16.msra.mxu0 0
      %509 = vmatprep.subr.bf16.mxu0 0
      %510 = vmatpush1.bf16.msra.mxu0 0
      %511 = vmatprep.subr.bf16.mxu0 0
      %512 = vmatpush1.bf16.msra.mxu0 0
      %513 = vmatprep.subr.bf16.mxu0 0
      %514 = vmatpush1.bf16.msra.mxu0 0
      %515 = vmatprep.subr.bf16.mxu0 0
      %516 = vmatpush1.bf16.msra.mxu0 0
      %517 = vmatprep.subr.bf16.mxu0 0
      %518 = vmatpush1.bf16.msra.mxu0 0
      %519 = vmatprep.mubr.bf16.mxu0 0
      %520 = vmatmul.mubr.bf16.gmra.mrb[0].mxu0 %v485
      %v521 = vpop.f32.mrb[0].mxu0
      %v522 = vadd.f32 %v483, %v521
      %v523 = vpop.f32.mrb[0].mxu0
      %v524 = vpop.f32.mrb[0].mxu0
      %v525 = vpop.f32.mrb[0].mxu0
      %526 = vdwg.mxu0
      %v527 = vxor.u32 %v522, 2147483648
      %v528 = vmul.f32 %v527, 1.442695
      %v529 = vpow.pop %v528
      %v530 = vadd.f32 %v529, 1.0
      %v531 = vrcp.pop %v530
      %v532 = vmul.f32 1.0, %v531
      %534 = vrot.lane.b32.xlu0 %v532, 96
      %v535 = vpop.permute.xlu0 %534
      %v537 = vmul.f32 %v522, %v535
      %v538 = vadd.f32 %v537, %v445
      %v539 = vmul.f32 %v538, 0.70710677
      %v540 = vld [vmem:[%s2 + $0x268] sm:$0xff]
      %v541 = vadd.f32 %v539, %v540
      %v542 = vld [vmem:[%s2 + $0x150] sm:$0xff]
      %v543 = vld [vmem:[%s2 + $0x158] sm:$0xff]
      %v544 = vld [vmem:[%s2 + $0x160] sm:$0xff]
      %v545 = vld [vmem:[%s2 + $0x168] sm:$0xff]
      %v546 = vld [vmem:[%s2 + $0x170] sm:$0x1]
      %v547 = vpack.c.bf16 %v541, %v541
      %v548 = vpack.c.bf16 %v543, %v542
      %v549 = vpack.c.bf16 %v545, %v544
      %v550 = vlaneseq
      %v551 = vshrl.u32 %v550, 7
      %v552 = vsub.s32 0, %v551
      %v553 = vrot.slane %v546, %v552
      %v555 = vsel %vm219, %v547, 0
      %557 = vmatprep.subr.bf16.mxu0 0
      %558 = vmatpush1.bf16.msra.mxu0 %v548
      %559 = vmatprep.subr.bf16.mxu0 0
      %560 = vmatpush1.bf16.msra.mxu0 %v549
      %561 = vmatprep.subr.bf16.mxu0 0
      %562 = vmatpush1.bf16.msra.mxu0 0
      %563 = vmatprep.subr.bf16.mxu0 0
      %564 = vmatpush1.bf16.msra.mxu0 0
      %565 = vmatprep.subr.bf16.mxu0 0
      %566 = vmatpush1.bf16.msra.mxu0 0
      %567 = vmatprep.subr.bf16.mxu0 0
      %568 = vmatpush1.bf16.msra.mxu0 0
      %569 = vmatprep.subr.bf16.mxu0 0
      %570 = vmatpush1.bf16.msra.mxu0 0
      %571 = vmatprep.subr.bf16.mxu0 0
      %572 = vmatpush1.bf16.msra.mxu0 0
      %573 = vmatprep.subr.bf16.mxu0 0
      %574 = vmatpush1.bf16.msra.mxu0 0
      %575 = vmatprep.subr.bf16.mxu0 0
      %576 = vmatpush1.bf16.msra.mxu0 0
      %577 = vmatprep.subr.bf16.mxu0 0
      %578 = vmatpush1.bf16.msra.mxu0 0
      %579 = vmatprep.subr.bf16.mxu0 0
      %580 = vmatpush1.bf16.msra.mxu0 0
      %581 = vmatprep.subr.bf16.mxu0 0
      %582 = vmatpush1.bf16.msra.mxu0 0
      %583 = vmatprep.subr.bf16.mxu0 0
      %584 = vmatpush1.bf16.msra.mxu0 0
      %585 = vmatprep.subr.bf16.mxu0 0
      %586 = vmatpush1.bf16.msra.mxu0 0
      %587 = vmatprep.subr.bf16.mxu0 0
      %588 = vmatpush1.bf16.msra.mxu0 0
      %589 = vmatprep.mubr.bf16.mxu0 0
      %590 = vmatmul.mubr.bf16.gmra.mrb[0].mxu0 %v555
      %v591 = vpop.f32.mrb[0].mxu0
      %v592 = vadd.f32 %v553, %v591
      %v593 = vpop.f32.mrb[0].mxu0
      %v594 = vpop.f32.mrb[0].mxu0
      %v595 = vpop.f32.mrb[0].mxu0
      %596 = vdwg.mxu0
      %v597 = vpack.c.bf16 %v592, %v592
      %v598 = vpack.c.bf16 %v294, %v294
      %v600 = vsel %vm219, %v597, 0
      %v603 = vsel %vm219, %v598, 0
      %605 = vmatprep.subr.bf16.mxu0 0
      %606 = vmatpush1.bf16.xpose.msra.mxu0 %v603
      %607 = vmatprep.subr.bf16.mxu0 0
      %608 = vmatpush1.bf16.xpose.msra.mxu0 0
      %609 = vmatprep.subr.bf16.mxu0 0
      %610 = vmatpush1.bf16.xpose.msra.mxu0 0
      %611 = vmatprep.subr.bf16.mxu0 0
      %612 = vmatpush1.bf16.xpose.msra.mxu0 0
      %613 = vmatprep.subr.bf16.mxu0 0
      %614 = vmatpush1.bf16.xpose.msra.mxu0 0
      %615 = vmatprep.subr.bf16.mxu0 0
      %616 = vmatpush1.bf16.xpose.msra.mxu0 0
      %617 = vmatprep.subr.bf16.mxu0 0
      %618 = vmatpush1.bf16.xpose.msra.mxu0 0
      %619 = vmatprep.subr.bf16.mxu0 0
      %620 = vmatpush1.bf16.xpose.msra.mxu0 0
      %621 = vmatprep.subr.bf16.mxu0 0
      %622 = vmatpush1.bf16.xpose.msra.mxu0 0
      %623 = vmatprep.subr.bf16.mxu0 0
      %624 = vmatpush1.bf16.xpose.msra.mxu0 0
      %625 = vmatprep.subr.bf16.mxu0 0
      %626 = vmatpush1.bf16.xpose.msra.mxu0 0
      %627 = vmatprep.subr.bf16.mxu0 0
      %628 = vmatpush1.bf16.xpose.msra.mxu0 0
      %629 = vmatprep.subr.bf16.mxu0 0
      %630 = vmatpush1.bf16.xpose.msra.mxu0 0
      %631 = vmatprep.subr.bf16.mxu0 0
      %632 = vmatpush1.bf16.xpose.msra.mxu0 0
      %633 = vmatprep.subr.bf16.mxu0 0
      %634 = vmatpush1.bf16.xpose.msra.mxu0 0
      %635 = vmatprep.subr.bf16.mxu0 0
      %636 = vmatpush1.bf16.xpose.msra.mxu0 0
      %637 = vmatprep.mubr.bf16.mxu0 0
      %638 = vmatmul.mubr.bf16.gmra.mrb[0].mxu0 %v600
      %v639 = vpop.f32.mrb[0].mxu0
      %v640 = vadd.f32 0.0, %v639
      %v641 = vpop.f32.mrb[0].mxu0
      %v642 = vpop.f32.mrb[0].mxu0
      %v643 = vpop.f32.mrb[0].mxu0
      %644 = vdwg.mxu0
      %vm645 = vcmask 64512
      %v646 = vsel %vm645, %v640, -inf
      %647 = vmax.xlane.f32.xlu0 %v646
      %v648 = vpop.xlane.xlu0 %647
      %v649 = vsub.f32 %v640, %v648
      %v650 = vmul.f32 %v649, 1.442695
      %v651 = vpow.pop %v650
      %v652 = vsel %vm645, %v651, 0.0
      %653 = vadd.xlane.f32.xlu0 %v652
      %v654 = vpop.xlane.xlu0 %653
      %v655 = vrcp.pop %v654
      %v656 = vmul.f32 %v651, %v655
      %v657 = vpack.c.bf16 %v656, %v656
      %v658 = vpack.c.bf16 %v292, %v292
      %v660 = vsel %vm645, %v657, 0
      %vm662 = vcmask 1043456
      %v664 = vsel %vm662, %v658, 0
      %666 = vmatprep.subr.bf16.mxu0 0
      %667 = vmatpush1.bf16.msra.mxu0 %v664
      %668 = vmatprep.subr.bf16.mxu0 0
      %669 = vmatpush1.bf16.msra.mxu0 0
      %670 = vmatprep.subr.bf16.mxu0 0
      %671 = vmatpush1.bf16.msra.mxu0 0
      %672 = vmatprep.subr.bf16.mxu0 0
      %673 = vmatpush1.bf16.msra.mxu0 0
      %674 = vmatprep.subr.bf16.mxu0 0
      %675 = vmatpush1.bf16.msra.mxu0 0
      %676 = vmatprep.subr.bf16.mxu0 0
      %677 = vmatpush1.bf16.msra.mxu0 0
      %678 = vmatprep.subr.bf16.mxu0 0
      %679 = vmatpush1.bf16.msra.mxu0 0
      %680 = vmatprep.subr.bf16.mxu0 0
      %681 = vmatpush1.bf16.msra.mxu0 0
      %682 = vmatprep.subr.bf16.mxu0 0
      %683 = vmatpush1.bf16.msra.mxu0 0
      %684 = vmatprep.subr.bf16.mxu0 0
      %685 = vmatpush1.bf16.msra.mxu0 0
      %686 = vmatprep.subr.bf16.mxu0 0
      %687 = vmatpush1.bf16.msra.mxu0 0
      %688 = vmatprep.subr.bf16.mxu0 0
      %689 = vmatpush1.bf16.msra.mxu0 0
      %690 = vmatprep.subr.bf16.mxu0 0
      %691 = vmatpush1.bf16.msra.mxu0 0
      %692 = vmatprep.subr.bf16.mxu0 0
      %693 = vmatpush1.bf16.msra.mxu0 0
      %694 = vmatprep.subr.bf16.mxu0 0
      %695 = vmatpush1.bf16.msra.mxu0 0
      %696 = vmatprep.subr.bf16.mxu0 0
      %697 = vmatpush1.bf16.msra.mxu0 0
      %698 = vmatprep.mubr.bf16.mxu0 0
      %699 = vmatmul.mubr.bf16.gmra.mrb[0].mxu0 %v660
      %v700 = vpop.f32.mrb[0].mxu0
      %v701 = vadd.f32 0.0, %v700
      %v702 = vpop.f32.mrb[0].mxu0
      %v703 = vpop.f32.mrb[0].mxu0
      %v704 = vpop.f32.mrb[0].mxu0
      %705 = vdwg.mxu0
      %v706 = vld [vmem:[%s2 + $0x178] sm:$0xff]
      %v707 = vld [vmem:[%s2 + $0x180] sm:$0xff]
      %v708 = vld [vmem:[%s2 + $0x188] sm:$0xff]
      %v709 = vld [vmem:[%s2 + $0x190] sm:$0xff]
      %v710 = vld [vmem:[%s2 + $0x198] sm:$0x1]
      %v711 = vpack.c.bf16 %v701, %v701
      %v712 = vpack.c.bf16 %v707, %v706
      %v713 = vpack.c.bf16 %v709, %v708
      %v714 = vlaneseq
      %v715 = vshrl.u32 %v714, 7
      %v716 = vsub.s32 0, %v715
      %v717 = vrot.slane %v710, %v716
      %v719 = vsel %vm219, %v711, 0
      %721 = vmatprep.subr.bf16.mxu0 0
      %722 = vmatpush1.bf16.msra.mxu0 %v712
      %723 = vmatprep.subr.bf16.mxu0 0
      %724 = vmatpush1.bf16.msra.mxu0 %v713
      %725 = vmatprep.subr.bf16.mxu0 0
      %726 = vmatpush1.bf16.msra.mxu0 0
      %727 = vmatprep.subr.bf16.mxu0 0
      %728 = vmatpush1.bf16.msra.mxu0 0
      %729 = vmatprep.subr.bf16.mxu0 0
      %730 = vmatpush1.bf16.msra.mxu0 0
      %731 = vmatprep.subr.bf16.mxu0 0
      %732 = vmatpush1.bf16.msra.mxu0 0
      %733 = vmatprep.subr.bf16.mxu0 0
      %734 = vmatpush1.bf16.msra.mxu0 0
      %735 = vmatprep.subr.bf16.mxu0 0
      %736 = vmatpush1.bf16.msra.mxu0 0
      %737 = vmatprep.subr.bf16.mxu0 0
      %738 = vmatpush1.bf16.msra.mxu0 0
      %739 = vmatprep.subr.bf16.mxu0 0
      %740 = vmatpush1.bf16.msra.mxu0 0
      %741 = vmatprep.subr.bf16.mxu0 0
      %742 = vmatpush1.bf16.msra.mxu0 0
      %743 = vmatprep.subr.bf16.mxu0 0
      %744 = vmatpush1.bf16.msra.mxu0 0
      %745 = vmatprep.subr.bf16.mxu0 0
      %746 = vmatpush1.bf16.msra.mxu0 0
      %747 = vmatprep.subr.bf16.mxu0 0
      %748 = vmatpush1.bf16.msra.mxu0 0
      %749 = vmatprep.subr.bf16.mxu0 0
      %750 = vmatpush1.bf16.msra.mxu0 0
      %751 = vmatprep.subr.bf16.mxu0 0
      %752 = vmatpush1.bf16.msra.mxu0 0
      %753 = vmatprep.mubr.bf16.mxu0 0
      %754 = vmatmul.mubr.bf16.gmra.mrb[0].mxu0 %v719
      %v755 = vpop.f32.mrb[0].mxu0
      %v756 = vadd.f32 %v717, %v755
      %v757 = vpop.f32.mrb[0].mxu0
      %v758 = vpop.f32.mrb[0].mxu0
      %v759 = vpop.f32.mrb[0].mxu0
      %760 = vdwg.mxu0
      %v761 = vadd.f32 %v756, %v541
      %v762 = vmul.f32 %v761, 0.70710677
      %v763 = vld [vmem:[%s2 + $0x1a0] sm:$0xff]
      %v764 = vld [vmem:[%s2 + $0x1a8] sm:$0xff]
      %v765 = vld [vmem:[%s2 + $0x1b0] sm:$0xff]
      %v766 = vld [vmem:[%s2 + $0x1b8] sm:$0xff]
      %v767 = vld [vmem:[%s2 + $0x1c0] sm:$0x1]
      %v768 = vpack.c.bf16 %v762, %v762
      %v769 = vpack.c.bf16 %v764, %v763
      %v770 = vpack.c.bf16 %v766, %v765
      %v771 = vlaneseq
      %v772 = vshrl.u32 %v771, 7
      %v773 = vsub.s32 0, %v772
      %v774 = vrot.slane %v767, %v773
      %v776 = vsel %vm219, %v768, 0
      %778 = vmatprep.subr.bf16.mxu0 0
      %779 = vmatpush1.bf16.msra.mxu0 %v769
      %780 = vmatprep.subr.bf16.mxu0 0
      %781 = vmatpush1.bf16.msra.mxu0 %v770
      %782 = vmatprep.subr.bf16.mxu0 0
      %783 = vmatpush1.bf16.msra.mxu0 0
      %784 = vmatprep.subr.bf16.mxu0 0
      %785 = vmatpush1.bf16.msra.mxu0 0
      %786 = vmatprep.subr.bf16.mxu0 0
      %787 = vmatpush1.bf16.msra.mxu0 0
      %788 = vmatprep.subr.bf16.mxu0 0
      %789 = vmatpush1.bf16.msra.mxu0 0
      %790 = vmatprep.subr.bf16.mxu0 0
      %791 = vmatpush1.bf16.msra.mxu0 0
      %792 = vmatprep.subr.bf16.mxu0 0
      %793 = vmatpush1.bf16.msra.mxu0 0
      %794 = vmatprep.subr.bf16.mxu0 0
      %795 = vmatpush1.bf16.msra.mxu0 0
      %796 = vmatprep.subr.bf16.mxu0 0
      %797 = vmatpush1.bf16.msra.mxu0 0
      %798 = vmatprep.subr.bf16.mxu0 0
      %799 = vmatpush1.bf16.msra.mxu0 0
      %800 = vmatprep.subr.bf16.mxu0 0
      %801 = vmatpush1.bf16.msra.mxu0 0
      %802 = vmatprep.subr.bf16.mxu0 0
      %803 = vmatpush1.bf16.msra.mxu0 0
      %804 = vmatprep.subr.bf16.mxu0 0
      %805 = vmatpush1.bf16.msra.mxu0 0
      %806 = vmatprep.subr.bf16.mxu0 0
      %807 = vmatpush1.bf16.msra.mxu0 0
      %808 = vmatprep.subr.bf16.mxu0 0
      %809 = vmatpush1.bf16.msra.mxu0 0
      %810 = vmatprep.mubr.bf16.mxu0 0
      %811 = vmatmul.mubr.bf16.gmra.mrb[0].mxu0 %v776
      %v812 = vpop.f32.mrb[0].mxu0
      %v813 = vadd.f32 %v774, %v812
      %v814 = vpop.f32.mrb[0].mxu0
      %v815 = vpop.f32.mrb[0].mxu0
      %v816 = vpop.f32.mrb[0].mxu0
      %817 = vdwg.mxu0
      %v818 = vxor.u32 %v813, 2147483648
      %v819 = vmul.f32 %v818, 1.442695
      %v820 = vpow.pop %v819
      %v821 = vadd.f32 %v820, 1.0
      %v822 = vrcp.pop %v821
      %v823 = vmul.f32 1.0, %v822
      %v824 = vld [vmem:[%s2 + $0x1c8] sm:$0x3]
      %v825 = vlaneseq
      %v826 = vshrl.u32 %v825, 7
      %v827 = vsub.s32 0, %v826
      %v828 = vrot.slane %v824, %v827
      %v829 = vmul.f32 %v813, %v828
      %v830 = vsel %vm304, %v829, 0.0
      %831 = vadd.xlane.f32.xlu0 %v830
      %v832 = vpop.xlane.xlu0 %831
      %v833 = vlaneseq
      %v834 = vshrl.u32 %v833, 7
      %v835 = vsub.s32 1, %v834
      %v836 = vrot.slane %v824, %v835
      %v837 = vadd.f32 %v832, %v836
      %v838 = vxor.u32 %v837, 2147483648
      %v839 = vmul.f32 %v838, 1.442695
      %v840 = vpow.pop %v839
      %v841 = vadd.f32 %v840, 1.0
      %v842 = vrcp.pop %v841
      %v843 = vmul.f32 1.0, %v842
      %v844 = vld [vmem:[%s2 + $0x1d0] sm:$0xff]
      %v845 = vld [vmem:[%s2 + $0x1d8] sm:$0xff]
      %v846 = vld [vmem:[%s2 + $0x1e0] sm:$0xff]
      %v847 = vld [vmem:[%s2 + $0x1e8] sm:$0xff]
      %v848 = vld [vmem:[%s2 + $0x1f0] sm:$0xff]
      %v849 = vld [vmem:[%s2 + $0x1f8] sm:$0xff]
      %v850 = vld [vmem:[%s2 + $0x200] sm:$0xff]
      %v851 = vld [vmem:[%s2 + $0x208] sm:$0xff]
      %v852 = vld [vmem:[%s2 + $0x210] sm:$0xff]
      %v853 = vld [vmem:[%s2 + $0x218] sm:$0xff]
      %v854 = vld [vmem:[%s2 + $0x220] sm:$0xff]
      %v855 = vld [vmem:[%s2 + $0x228] sm:$0xff]
      %v856 = vld [vmem:[%s2 + $0x230] sm:$0x1]
      %v857 = vrot.slane %v762, 7
      %v858 = vsel %vm204, %v857, 0.0
      %v859 = vrot.slane %v762, 1
      %v860 = vsel %vm209, %v859, 0.0
      %862 = vrot.lane.b32.xlu0 %v762, 32
      %v863 = vpop.permute.xlu0 %862
      %866 = vrot.lane.b32.xlu0 %v860, 64
      %v867 = vpop.permute.xlu0 %866
      %v869 = vsel %vm219, %v858, %v863
      %v870 = vsel %vm221, %v869, %v867
      %v871 = vpack.c.bf16 %v870, %v870
      %v872 = vpack.c.bf16 %v845, %v844
      %v873 = vpack.c.bf16 %v847, %v846
      %v874 = vpack.c.bf16 %v849, %v848
      %v875 = vpack.c.bf16 %v851, %v850
      %v876 = vpack.c.bf16 %v853, %v852
      %v877 = vpack.c.bf16 %v855, %v854
      %v878 = vlaneseq
      %v879 = vshrl.u32 %v878, 7
      %v880 = vsub.s32 0, %v879
      %v881 = vrot.slane %v856, %v880
      %v883 = vsel %vm234, %v871, 0
      %885 = vmatprep.subr.bf16.mxu0 0
      %886 = vmatpush1.bf16.msra.mxu0 %v872
      %887 = vmatprep.subr.bf16.mxu0 0
      %888 = vmatpush1.bf16.msra.mxu0 %v873
      %889 = vmatprep.subr.bf16.mxu0 0
      %890 = vmatpush1.bf16.msra.mxu0 %v874
      %891 = vmatprep.subr.bf16.mxu0 0
      %892 = vmatpush1.bf16.msra.mxu0 %v875
      %893 = vmatprep.subr.bf16.mxu0 0
      %894 = vmatpush1.bf16.msra.mxu0 %v876
      %895 = vmatprep.subr.bf16.mxu0 0
      %896 = vmatpush1.bf16.msra.mxu0 %v877
      %897 = vmatprep.subr.bf16.mxu0 0
      %898 = vmatpush1.bf16.msra.mxu0 0
      %899 = vmatprep.subr.bf16.mxu0 0
      %900 = vmatpush1.bf16.msra.mxu0 0
      %901 = vmatprep.subr.bf16.mxu0 0
      %902 = vmatpush1.bf16.msra.mxu0 0
      %903 = vmatprep.subr.bf16.mxu0 0
      %904 = vmatpush1.bf16.msra.mxu0 0
      %905 = vmatprep.subr.bf16.mxu0 0
      %906 = vmatpush1.bf16.msra.mxu0 0
      %907 = vmatprep.subr.bf16.mxu0 0
      %908 = vmatpush1.bf16.msra.mxu0 0
      %909 = vmatprep.subr.bf16.mxu0 0
      %910 = vmatpush1.bf16.msra.mxu0 0
      %911 = vmatprep.subr.bf16.mxu0 0
      %912 = vmatpush1.bf16.msra.mxu0 0
      %913 = vmatprep.subr.bf16.mxu0 0
      %914 = vmatpush1.bf16.msra.mxu0 0
      %915 = vmatprep.subr.bf16.mxu0 0
      %916 = vmatpush1.bf16.msra.mxu0 0
      %917 = vmatprep.mubr.bf16.mxu0 0
      %918 = vmatmul.mubr.bf16.gmra.mrb[0].mxu0 %v883
      %v919 = vpop.f32.mrb[0].mxu0
      %v920 = vadd.f32 %v881, %v919
      %v921 = vpop.f32.mrb[0].mxu0
      %v922 = vpop.f32.mrb[0].mxu0
      %v923 = vpop.f32.mrb[0].mxu0
      %924 = vdwg.mxu0
      %v925 = vxor.u32 %v920, 2147483648
      %v926 = vmul.f32 %v925, 1.442695
      %v927 = vpow.pop %v926
      %v928 = vadd.f32 %v927, 1.0
      %v929 = vrcp.pop %v928
      %v930 = vmul.f32 1.0, %v929
      %932 = vrot.lane.b32.xlu0 %v930, 96
      %v933 = vpop.permute.xlu0 %932
      %v935 = vmul.f32 %v920, %v933
      %v936 = vadd.f32 %v935, %v762
      %v937 = vmul.f32 %v936, 0.70710677
      %v938 = vld [vmem:[%s2 + $0x238] sm:$0xff]
      %v939 = vld [vmem:[%s2 + $0x240] sm:$0xff]
      %v940 = vld [vmem:[%s2 + $0x248] sm:$0xff]
      %v941 = vld [vmem:[%s2 + $0x250] sm:$0xff]
      %v942 = vld [vmem:[%s2 + $0x258] sm:$0x1]
      %v943 = vpack.c.bf16 %v937, %v937
      %v944 = vpack.c.bf16 %v939, %v938
      %v945 = vpack.c.bf16 %v941, %v940
      %v946 = vlaneseq
      %v947 = vshrl.u32 %v946, 7
      %v948 = vsub.s32 0, %v947
      %v949 = vrot.slane %v942, %v948
      %v951 = vsel %vm219, %v943, 0
      %953 = vmatprep.subr.bf16.mxu0 0
      %954 = vmatpush1.bf16.msra.mxu0 %v944
      %955 = vmatprep.subr.bf16.mxu0 0
      %956 = vmatpush1.bf16.msra.mxu0 %v945
      %957 = vmatprep.subr.bf16.mxu0 0
      %958 = vmatpush1.bf16.msra.mxu0 0
      %959 = vmatprep.subr.bf16.mxu0 0
      %960 = vmatpush1.bf16.msra.mxu0 0
      %961 = vmatprep.subr.bf16.mxu0 0
      %962 = vmatpush1.bf16.msra.mxu0 0
      %963 = vmatprep.subr.bf16.mxu0 0
      %964 = vmatpush1.bf16.msra.mxu0 0
      %965 = vmatprep.subr.bf16.mxu0 0
      %966 = vmatpush1.bf16.msra.mxu0 0
      %967 = vmatprep.subr.bf16.mxu0 0
      %968 = vmatpush1.bf16.msra.mxu0 0
      %969 = vmatprep.subr.bf16.mxu0 0
      %970 = vmatpush1.bf16.msra.mxu0 0
      %971 = vmatprep.subr.bf16.mxu0 0
      %972 = vmatpush1.bf16.msra.mxu0 0
      %973 = vmatprep.subr.bf16.mxu0 0
      %974 = vmatpush1.bf16.msra.mxu0 0
      %975 = vmatprep.subr.bf16.mxu0 0
      %976 = vmatpush1.bf16.msra.mxu0 0
      %977 = vmatprep.subr.bf16.mxu0 0
      %978 = vmatpush1.bf16.msra.mxu0 0
      %979 = vmatprep.subr.bf16.mxu0 0
      %980 = vmatpush1.bf16.msra.mxu0 0
      %981 = vmatprep.subr.bf16.mxu0 0
      %982 = vmatpush1.bf16.msra.mxu0 0
      %983 = vmatprep.subr.bf16.mxu0 0
      %984 = vmatpush1.bf16.msra.mxu0 0
      %985 = vmatprep.mubr.bf16.mxu0 0
      %986 = vmatmul.mubr.bf16.gmra.mrb[0].mxu0 %v951
      %v987 = vpop.f32.mrb[0].mxu0
      %v988 = vadd.f32 %v949, %v987
      %v989 = vpop.f32.mrb[0].mxu0
      %v990 = vpop.f32.mrb[0].mxu0
      %v991 = vpop.f32.mrb[0].mxu0
      %992 = vdwg.mxu0
      %v993 = vxor.u32 %v988, 2147483648
      %v994 = vmul.f32 %v993, 1.442695
      %v995 = vpow.pop %v994
      %v996 = vadd.f32 %v995, 1.0
      %v997 = vrcp.pop %v996
      %v998 = vmul.f32 1.0, %v997
      %1000 = vrot.lane.b32.xlu0 %v843, 16
      %v1001 = vpop.permute.xlu0 %1000
      %1004 = vrot.lane.b32.xlu0 %v998, 32
      %v1005 = vpop.permute.xlu0 %1004
      %1008 = vrot.lane.b32.xlu0 %v656, 96
      %v1009 = vpop.permute.xlu0 %1008
      %v1011 = vsel %vm304, %v823, %v1001
      %vm1012 = vcmask 138240
      %v1013 = vsel %vm1012, %v1011, 0.0
      %v1014 = vsel %vm219, %v1013, %v1005
      %v1015 = vsel %vm234, %v1014, %v1009
      %vm1016 = vcmask 850944
      %v1017 = vsel %vm1016, %v1015, 0.0
      %1018 = vst [vmem:[%s182] sm:$0xff] %v1017
      %p1019 = scmp.lt.s32.totalorder %s14, 1
      %s1020 = scalar_select %p1019, %s14, 1
      %s1021 = smul.addr %s1020, 8
      %s1022 = scalar_lea.vmem %s3, %s1021
      // Predicated region
      $region33: #{deepvoice3_forward.1} parent=31 // pred_check
        %p1023 = pneg %p105
      $region34: #{deepvoice3_forward.1} parent=31 // pred_check_branch
        %1025 = sbr.rel (%p1023) target = $region36
      $region35: #{deepvoice3_forward.1} parent=31 // pred_region
        _
      $region36: #{deepvoice3_forward.1} parent=31 // pred_fallthru
        _
    $region32: #{deepvoice3_forward.1} parent=5 // pred_fallthru
      _
    %p1026 = scmp.le.s32.totalorder 2, %s9
    // Predicated region
    $region37: #{deepvoice3_forward.1} parent=5 // pred_check
      %p1027 = pneg %p1026
    $region38: #{deepvoice3_forward.1} parent=5 // pred_check_branch
      %1029 = sbr.rel (%p1027) target = $region40
    $region39: #{deepvoice3_forward.1} parent=5 // pred_region
      %s1030 = ssub.s32 %s9, 2
      // Predicated region
      $region41: #{deepvoice3_forward.1} parent=39 // pred_check
        %p1031 = pneg %p111
      $region42: #{deepvoice3_forward.1} parent=39 // pred_check_branch
        %1033 = sbr.rel (%p1031) target = $region44
      $region43: #{deepvoice3_forward.1} parent=39 // pred_region
        %p1034 = scmp.lt.s32.totalorder %s15, 1
        %s1035 = scalar_select %p1034, %s15, 1
        %s1036 = smul.addr %s1035, 8
        %s1037 = scalar_lea.vmem %s3, %s1036
      $region44: #{deepvoice3_forward.1} parent=39 // pred_fallthru
        _
    $region40: #{deepvoice3_forward.1} parent=5 // pred_fallthru
      _
  $region6: #{deepvoice3_forward.1} parent=0 // loop_footer
    %s13 = sadd.s32 1, %s9
  $region7: #{deepvoice3_forward.1} parent=0 // loop_footer_branch
    %8 = sbr.rel target = $region3
  $region8: #{deepvoice3_forward.1} parent=0 // loop_exit
    _

</llo_original>
